<compile_context>
chip_gen: v6e
topology: v6e:2x2x1
jax: 0.10.0
libtpu: 0.0.40
codegen_flags: <defaults>
</compile_context>

<pallas_src>
import functools

import jax
import jax.numpy as jnp
from jax.experimental import pallas as pl
from jax.experimental.pallas import tpu as pltpu

_LANES = 128
_SUBLANES = 8
# Whole-kernel VMEM budget: leaves headroom on v7x's 64 MiB physical VMEM and is
# far below v5e / v6e's 128 MiB.
_VMEM_BUDGET = 48 * 1024 * 1024


def _round_up(n, m):
    return -(-n // m) * m


def _mlp_kernel(*refs, num_blocks, has_head):
    # refs = (x_ref, w_0, b_0, ..., w_{n-1}, b_{n-1}, [w_head, b_head], out_ref)
    x_ref = refs[0]
    out_ref = refs[-1]
    params = refs[1:-1]

    h = x_ref[...]
    for layer in range(num_blocks):
        w = params[2 * layer][...]          # (d_prev, d_l)
        b = params[2 * layer + 1][...]      # (1, d_l)
        acc = jnp.dot(h, w, preferred_element_type=jnp.float32)
        h = jnp.maximum(acc + b.astype(jnp.float32), 0.0).astype(w.dtype)
        # TODO(synk): rtdl baseline blocks include Dropout; eval-mode (identity) here.
    if has_head:
        w = params[2 * num_blocks][...]
        b = params[2 * num_blocks + 1][...]
        h = jnp.dot(h, w, preferred_element_type=jnp.float32) + b.astype(jnp.float32)
    out_ref[...] = h.astype(out_ref.dtype)


def _pick_block_b(B, per_row_bytes, resident_bytes, budget):
    """Largest layout-friendly B tile that fits the VMEM budget, preferring an
    even number (>=2) of grid steps so both v7x TensorCores get work."""
    cap = max(_SUBLANES, (budget - resident_bytes) // max(per_row_bytes, 1))
    cands = [c for c in range(_SUBLANES, B + 1, _SUBLANES) if B % c == 0] or [B]
    fitting = [c for c in cands if c <= cap]
    if not fitting:
        return min(cands)

    def pref(bb):
        steps = B // bb
        return (steps >= 2 and steps % 2 == 0, bb)

    return max(fitting, key=pref)


def mlp_forward(x, weights, biases, head=None, *, block_b=None):
    """Fused rtdl-baseline MLP forward (eval mode).

    x: (B, d_in).  weights[i]: (d_prev, d_i)  (already transposed vs torch's
    (d_i, d_prev));  biases[i]: (d_i,).  Each block is Linear -> ReLU (Dropout
    is identity in eval).  head=(w_head, b_head) appends a final Linear with no
    activation (the headless=False path).  Returns (B, d_last) in x.dtype.

    Fast path on v6e / v7x: pass bf16 x / weights / biases (MXU accumulation
    stays f32); this roughly halves HBM traffic in this HBM-bound regime.
    """
    B, d_in = x.shape
    num_blocks = len(weights)
    assert len(biases) == num_blocks and num_blocks >= 1

    layers = list(zip(weights, biases))
    has_head = head is not None
    if has_head:
        layers.append(tuple(head))

    # Shape checks on the original (unpadded) parameters.
    d_prev = d_in
    for w, b in layers:
        assert w.shape[0] == d_prev and b.shape == (w.shape[1],)
        d_prev = w.shape[1]
    d_out = layers[-1][0].shape[1]

    # Lane-dense output: pad the final layer's output columns to a multiple of
    # 128 with zero weight/bias columns; slice the result in the wrapper.
    d_out_pad = _round_up(d_out, _LANES)
    if d_out_pad != d_out:
        w_last, b_last = layers[-1]
        pad = d_out_pad - d_out
        layers[-1] = (jnp.pad(w_last, ((0, 0), (0, pad))),
                      jnp.pad(b_last, ((0, pad),)))

    dims = [d_in] + [w.shape[1] for w, _ in layers]
    params = []
    for w, b in layers:
        params += [w, b.reshape(1, -1)]

    x_itm = x.dtype.itemsize
    out_itm = x.dtype.itemsize
    # Single-buffered (constant-block) weights/biases resident in VMEM.
    resident_bytes = sum(int(p.size) * p.dtype.itemsize for p in params)
    # Per-B-row VMEM: double-buffered x / out tiles + f32 layer intermediates.
    per_row_bytes = (2 * d_in * x_itm + 2 * d_out_pad * out_itm
                     + 4 * sum(dims) + 2 * max(dims) * x_itm)

    if block_b is None:
        block_b = _pick_block_b(B, per_row_bytes, resident_bytes, _VMEM_BUDGET)
    assert B % block_b == 0
    grid = (B // block_b,)

    vmem_est = resident_bytes + block_b * per_row_bytes
    vmem_limit = int(min(64 * 1024 * 1024,
                         max(32 * 1024 * 1024, int(1.5 * vmem_est))))

    x_spec = pl.BlockSpec((block_b, d_in), lambda i: (i, 0))
    out_spec = pl.BlockSpec((block_b, d_out_pad), lambda i: (i, 0))

    flops = 2 * B * sum(dims[l] * dims[l + 1] for l in range(len(dims) - 1))
    bytes_accessed = (x.size * x_itm
                      + sum(int(p.size) * p.dtype.itemsize for p in params)
                      + B * d_out_pad * out_itm)
    cost = pl.CostEstimate(flops=flops, transcendentals=0,
                           bytes_accessed=bytes_accessed)

    kernel = functools.partial(_mlp_kernel, num_blocks=num_blocks,
                               has_head=has_head)

    def _call(single_buffer_weights):
        # Whole-array blocks, constant index map: fetched into VMEM once and
        # resident across every B-tile grid step.  Buffered(1) drops the
        # pointless second buffer for these never-changing blocks.
        mode = pl.Buffered(1) if single_buffer_weights else None
        param_specs = [
            pl.BlockSpec(p.shape, lambda i: (0, 0), pipeline_mode=mode)
            for p in params
        ]
        return pl.pallas_call(
            kernel,
            out_shape=jax.ShapeDtypeStruct((B, d_out_pad), x.dtype),
            grid_spec=pltpu.PrefetchScalarGridSpec(
                num_scalar_prefetch=0,
                grid=grid,
                in_specs=[x_spec] + param_specs,
                out_specs=out_spec,
            ),
            compiler_params=pltpu.CompilerParams(
                dimension_semantics=("parallel",),
                vmem_limit_bytes=vmem_limit,
            ),
            cost_estimate=cost,
        )(x, *params)

    try:
        out = _call(single_buffer_weights=True)
    except Exception:
        # Guard for Pallas builds without per-BlockSpec pipeline_mode support:
        # fall back to default double-buffered weight blocks.
        out = _call(single_buffer_weights=False)

    return out[:, :d_out] if d_out_pad != d_out else out


def init_mlp_params(key, d_in, d_layers, dtype=jnp.float32):
    """Mirror nn.Linear init: U(-1/sqrt(fan_in), 1/sqrt(fan_in)) for weight & bias.

    Weights are stored transposed as (d_prev, d_l), ready for x @ W.
    """
    weights, biases = [], []
    d_prev = d_in
    for d_l in d_layers:
        key, kw, kb = jax.random.split(key, 3)
        bound = 1.0 / jnp.sqrt(jnp.asarray(d_prev, jnp.float32))
        weights.append(jax.random.uniform(kw, (d_prev, d_l), dtype, -bound, bound))
        biases.append(jax.random.uniform(kb, (d_l,), dtype, -bound, bound))
        d_prev = d_l
    return weights, biases


if __name__ == "__main__":
    # Small, layout-friendly demo: lane-dense hidden dims (128).  B=256 with the
    # default tile selection gives block_b=128 -> grid=(2,), so both v7x
    # TensorCores get work and the pipeline has >=2 steps to overlap DMA.
    B, d_in = 256, 64
    d_layers = (128, 128)          # config['d_layers']; headless -> output = 128

    key = jax.random.PRNGKey(0)
    kx, kp, kh = jax.random.split(key, 3)
    x = jax.random.normal(kx, (B, d_in), jnp.float32)
    weights, biases = init_mlp_params(kp, d_in, d_layers)

    # ---- headless=True path (the module's default forward), f32 -------------
    out = jax.block_until_ready(mlp_forward(x, weights, biases))

    ref = x
    for w, b in zip(weights, biases):
        ref = jnp.maximum(ref @ w + b, 0.0)
    assert out.shape == (B, d_layers[-1])
    assert jnp.allclose(out, ref, atol=1e-4, rtol=1e-4)

    # ---- headless=False path with a narrow head (d_out=1), bf16 fast path ---
    # Exercises the lane-padding of the narrow output and the halved-HBM-traffic
    # dtype path recommended for v6e / v7x.
    kw, kb = jax.random.split(kh)
    bound = 1.0 / jnp.sqrt(jnp.asarray(d_layers[-1], jnp.float32))
    head_w = jax.random.uniform(kw, (d_layers[-1], 1), jnp.float32, -bound, bound)
    head_b = jax.random.uniform(kb, (1,), jnp.float32, -bound, bound)

    x16 = x.astype(jnp.bfloat16)
    w16 = [w.astype(jnp.bfloat16) for w in weights]
    b16 = [b.astype(jnp.bfloat16) for b in biases]
    head16 = (head_w.astype(jnp.bfloat16), head_b.astype(jnp.bfloat16))
    out_h = jax.block_until_ready(mlp_forward(x16, w16, b16, head=head16))

    ref_h = ref @ head_w + head_b
    assert out_h.shape == (B, 1)
    # bf16 I/O + per-layer bf16 activations vs f32 reference -> loose tolerance.
    assert jnp.allclose(out_h.astype(jnp.float32), ref_h, atol=5e-2, rtol=5e-2)

    print("KERNEL_OK")
</pallas_src>

<mosaic_0001>
module attributes {stable_mosaic.version = 11 : i64} {
  func.func @_mlp_kernel(%arg0: i32, %arg1: memref<128x64xf32, #tpu.memory_space<vmem>>, %arg2: memref<64x128xf32, #tpu.memory_space<vmem>>, %arg3: memref<1x128xf32, #tpu.memory_space<vmem>>, %arg4: memref<128x128xf32, #tpu.memory_space<vmem>>, %arg5: memref<1x128xf32, #tpu.memory_space<vmem>>, %arg6: memref<128x128xf32, #tpu.memory_space<vmem>>) attributes {dimension_semantics = [#tpu.dimension_semantics<parallel>], iteration_bounds = array<i64: 2>, scalar_prefetch = 0 : i64, scratch_operands = 0 : i64, tpu.core_type = #tpu.core_type<tc>, window_params = [{transform_indices = @transform_0, window_bounds = array<i64: 128, 64>}, {pipeline_mode = #tpu.pipeline_mode<synchronous>, transform_indices = @transform_1, window_bounds = array<i64: 64, 128>}, {pipeline_mode = #tpu.pipeline_mode<synchronous>, transform_indices = @transform_2, window_bounds = array<i64: 1, 128>}, {pipeline_mode = #tpu.pipeline_mode<synchronous>, transform_indices = @transform_3, window_bounds = array<i64: 128, 128>}, {pipeline_mode = #tpu.pipeline_mode<synchronous>, transform_indices = @transform_4, window_bounds = array<i64: 1, 128>}, {transform_indices = @transform_5, window_bounds = array<i64: 128, 128>}]} {
    %c0 = arith.constant 0 : index
    %c0_0 = arith.constant 0 : index
    %0 = vector.load %arg1[%c0, %c0_0] : memref<128x64xf32, #tpu.memory_space<vmem>>, vector<128x64xf32>
    %c0_1 = arith.constant 0 : index
    %c0_2 = arith.constant 0 : index
    %1 = vector.load %arg2[%c0_1, %c0_2] : memref<64x128xf32, #tpu.memory_space<vmem>>, vector<64x128xf32>
    %c0_3 = arith.constant 0 : index
    %c0_4 = arith.constant 0 : index
    %2 = vector.load %arg3[%c0_3, %c0_4] : memref<1x128xf32, #tpu.memory_space<vmem>>, vector<1x128xf32>
    %cst = arith.constant dense<0.000000e+00> : vector<128x128xf32>
    %3 = tpu.matmul %0, %1, %cst {dimension_numbers = #tpu.dot_dimension_numbers<[1], [0], [0], [1], [0, 0, 1, 1], [], []>} : vector<128x64xf32>, vector<64x128xf32>, vector<128x128xf32> -> vector<128x128xf32>
    %4 = vector.broadcast %2 : vector<1x128xf32> to vector<128x128xf32>
    %5 = arith.addf %3, %4 : vector<128x128xf32>
    %cst_5 = arith.constant 0.000000e+00 : f32
    %6 = vector.broadcast %cst_5 : f32 to vector<128x128xf32>
    %7 = arith.maximumf %5, %6 : vector<128x128xf32>
    %c0_6 = arith.constant 0 : index
    %c0_7 = arith.constant 0 : index
    %8 = vector.load %arg4[%c0_6, %c0_7] : memref<128x128xf32, #tpu.memory_space<vmem>>, vector<128x128xf32>
    %c0_8 = arith.constant 0 : index
    %c0_9 = arith.constant 0 : index
    %9 = vector.load %arg5[%c0_8, %c0_9] : memref<1x128xf32, #tpu.memory_space<vmem>>, vector<1x128xf32>
    %cst_10 = arith.constant dense<0.000000e+00> : vector<128x128xf32>
    %10 = tpu.matmul %7, %8, %cst_10 {dimension_numbers = #tpu.dot_dimension_numbers<[1], [0], [0], [1], [0, 0, 1, 1], [], []>} : vector<128x128xf32>, vector<128x128xf32>, vector<128x128xf32> -> vector<128x128xf32>
    %11 = vector.broadcast %9 : vector<1x128xf32> to vector<128x128xf32>
    %12 = arith.addf %10, %11 : vector<128x128xf32>
    %cst_11 = arith.constant 0.000000e+00 : f32
    %13 = vector.broadcast %cst_11 : f32 to vector<128x128xf32>
    %14 = arith.maximumf %12, %13 : vector<128x128xf32>
    %c0_12 = arith.constant 0 : index
    %c0_13 = arith.constant 0 : index
    %15 = vector.load %arg6[%c0_12, %c0_13] : memref<128x128xf32, #tpu.memory_space<vmem>>, vector<128x128xf32>
    tpu.vector_store %arg6[%c0_12, %c0_13], %14 {strides = array<i32>} : memref<128x128xf32, #tpu.memory_space<vmem>>, vector<128x128xf32>,
    return
  }
  func.func @transform_0(%arg0: i32) -> (i32, i32) {
    %c0_i32 = arith.constant 0 : i32
    %c0_i32_0 = arith.constant 0 : i32
    return %arg0, %c0_i32 : i32, i32
  }
  func.func @transform_1(%arg0: i32) -> (i32, i32) {
    %c0_i32 = arith.constant 0 : i32
    %c0_i32_0 = arith.constant 0 : i32
    %c0_i32_1 = arith.constant 0 : i32
    return %c0_i32, %c0_i32_0 : i32, i32
  }
  func.func @transform_2(%arg0: i32) -> (i32, i32) {
    %c0_i32 = arith.constant 0 : i32
    %c0_i32_0 = arith.constant 0 : i32
    %c0_i32_1 = arith.constant 0 : i32
    return %c0_i32, %c0_i32_0 : i32, i32
  }
  func.func @transform_3(%arg0: i32) -> (i32, i32) {
    %c0_i32 = arith.constant 0 : i32
    %c0_i32_0 = arith.constant 0 : i32
    %c0_i32_1 = arith.constant 0 : i32
    return %c0_i32, %c0_i32_0 : i32, i32
  }
  func.func @transform_4(%arg0: i32) -> (i32, i32) {
    %c0_i32 = arith.constant 0 : i32
    %c0_i32_0 = arith.constant 0 : i32
    %c0_i32_1 = arith.constant 0 : i32
    return %c0_i32, %c0_i32_0 : i32, i32
  }
  func.func @transform_5(%arg0: i32) -> (i32, i32) {
    %c0_i32 = arith.constant 0 : i32
    %c0_i32_0 = arith.constant 0 : i32
    return %arg0, %c0_i32 : i32, i32
  }
}

module attributes {stable_mosaic.version = 11 : i64} {
  func.func @_mlp_kernel(%arg0: i32, %arg1: memref<128x64xf32, #tpu.memory_space<vmem>>, %arg2: memref<64x128xf32, #tpu.memory_space<vmem>>, %arg3: memref<1x128xf32, #tpu.memory_space<vmem>>, %arg4: memref<128x128xf32, #tpu.memory_space<vmem>>, %arg5: memref<1x128xf32, #tpu.memory_space<vmem>>, %arg6: memref<128x128xf32, #tpu.memory_space<vmem>>) attributes {dimension_semantics = [#tpu.dimension_semantics<parallel>], iteration_bounds = array<i64: 2>, scalar_prefetch = 0 : i64, scratch_operands = 0 : i64, tpu.core_type = #tpu.core_type<tc>, window_params = [{transform_indices = @transform_0, window_bounds = array<i64: 128, 64>}, {pipeline_mode = #tpu.pipeline_mode<synchronous>, transform_indices = @transform_1, window_bounds = array<i64: 64, 128>}, {pipeline_mode = #tpu.pipeline_mode<synchronous>, transform_indices = @transform_2, window_bounds = array<i64: 1, 128>}, {pipeline_mode = #tpu.pipeline_mode<synchronous>, transform_indices = @transform_3, window_bounds = array<i64: 128, 128>}, {pipeline_mode = #tpu.pipeline_mode<synchronous>, transform_indices = @transform_4, window_bounds = array<i64: 1, 128>}, {transform_indices = @transform_5, window_bounds = array<i64: 128, 128>}]} {
    %c0 = arith.constant 0 : index
    %c0_0 = arith.constant 0 : index
    %0 = vector.load %arg1[%c0, %c0_0] : memref<128x64xf32, #tpu.memory_space<vmem>>, vector<128x64xf32>
    %c0_1 = arith.constant 0 : index
    %c0_2 = arith.constant 0 : index
    %1 = vector.load %arg2[%c0_1, %c0_2] : memref<64x128xf32, #tpu.memory_space<vmem>>, vector<64x128xf32>
    %c0_3 = arith.constant 0 : index
    %c0_4 = arith.constant 0 : index
    %2 = vector.load %arg3[%c0_3, %c0_4] : memref<1x128xf32, #tpu.memory_space<vmem>>, vector<1x128xf32>
    %cst = arith.constant dense<0.000000e+00> : vector<128x128xf32>
    %3 = tpu.matmul %0, %1, %cst {dimension_numbers = #tpu.dot_dimension_numbers<[1], [0], [0], [1], [0, 0, 1, 1], [], []>} : vector<128x64xf32>, vector<64x128xf32>, vector<128x128xf32> -> vector<128x128xf32>
    %4 = vector.broadcast %2 : vector<1x128xf32> to vector<128x128xf32>
    %5 = arith.addf %3, %4 : vector<128x128xf32>
    %cst_5 = arith.constant 0.000000e+00 : f32
    %6 = vector.broadcast %cst_5 : f32 to vector<128x128xf32>
    %7 = arith.maximumf %5, %6 : vector<128x128xf32>
    %c0_6 = arith.constant 0 : index
    %c0_7 = arith.constant 0 : index
    %8 = vector.load %arg4[%c0_6, %c0_7] : memref<128x128xf32, #tpu.memory_space<vmem>>, vector<128x128xf32>
    %c0_8 = arith.constant 0 : index
    %c0_9 = arith.constant 0 : index
    %9 = vector.load %arg5[%c0_8, %c0_9] : memref<1x128xf32, #tpu.memory_space<vmem>>, vector<1x128xf32>
    %cst_10 = arith.constant dense<0.000000e+00> : vector<128x128xf32>
    %10 = tpu.matmul %7, %8, %cst_10 {dimension_numbers = #tpu.dot_dimension_numbers<[1], [0], [0], [1], [0, 0, 1, 1], [], []>} : vector<128x128xf32>, vector<128x128xf32>, vector<128x128xf32> -> vector<128x128xf32>
    %11 = vector.broadcast %9 : vector<1x128xf32> to vector<128x128xf32>
    %12 = arith.addf %10, %11 : vector<128x128xf32>
    %cst_11 = arith.constant 0.000000e+00 : f32
    %13 = vector.broadcast %cst_11 : f32 to vector<128x128xf32>
    %14 = arith.maximumf %12, %13 : vector<128x128xf32>
    %c0_12 = arith.constant 0 : index
    %c0_13 = arith.constant 0 : index
    %15 = vector.load %arg6[%c0_12, %c0_13] : memref<128x128xf32, #tpu.memory_space<vmem>>, vector<128x128xf32>
    tpu.vector_store %arg6[%c0_12, %c0_13], %14 {strides = array<i32>} : memref<128x128xf32, #tpu.memory_space<vmem>>, vector<128x128xf32>,
    return
  }
  func.func @transform_0(%arg0: i32) -> (i32, i32) {
    %c0_i32 = arith.constant 0 : i32
    %c0_i32_0 = arith.constant 0 : i32
    return %arg0, %c0_i32 : i32, i32
  }
  func.func @transform_1(%arg0: i32) -> (i32, i32) {
    %c0_i32 = arith.constant 0 : i32
    %c0_i32_0 = arith.constant 0 : i32
    %c0_i32_1 = arith.constant 0 : i32
    return %c0_i32, %c0_i32_0 : i32, i32
  }
  func.func @transform_2(%arg0: i32) -> (i32, i32) {
    %c0_i32 = arith.constant 0 : i32
    %c0_i32_0 = arith.constant 0 : i32
    %c0_i32_1 = arith.constant 0 : i32
    return %c0_i32, %c0_i32_0 : i32, i32
  }
  func.func @transform_3(%arg0: i32) -> (i32, i32) {
    %c0_i32 = arith.constant 0 : i32
    %c0_i32_0 = arith.constant 0 : i32
    %c0_i32_1 = arith.constant 0 : i32
    return %c0_i32, %c0_i32_0 : i32, i32
  }
  func.func @transform_4(%arg0: i32) -> (i32, i32) {
    %c0_i32 = arith.constant 0 : i32
    %c0_i32_0 = arith.constant 0 : i32
    %c0_i32_1 = arith.constant 0 : i32
    return %c0_i32, %c0_i32_0 : i32, i32
  }
  func.func @transform_5(%arg0: i32) -> (i32, i32) {
    %c0_i32 = arith.constant 0 : i32
    %c0_i32_0 = arith.constant 0 : i32
    return %arg0, %c0_i32 : i32, i32
  }
}

</mosaic_0001>

<llo_original>
// kernel: tpu_custom_call.1
$region0: #{tpu_custom_call.1}
  #allocation0 [shape = 'u32[]', space=smem, size = 0x4, offset = 0x4, fixed_abs, tag = 'smem constant byte address 0x4 - core index']
  #allocation1 [shape = 'u32[144,128]{1,0:T(1,128)}', space=vmem, size = 0x12000, scoped, tag = 'internal scratch']
  %s0 = inlined_call_operand.vmem [shape: f32[256,64], index: 0, kind: input, shape index: {}]
  %s1 = inlined_call_operand.vmem [shape: f32[64,128], index: 1, kind: input, shape index: {}]
  %s2 = inlined_call_operand.vmem [shape: f32[1,128], index: 2, kind: input, shape index: {}]
  %s3 = inlined_call_operand.vmem [shape: f32[128,128], index: 3, kind: input, shape index: {}]
  %s4 = inlined_call_operand.vmem [shape: f32[1,128], index: 4, kind: input, shape index: {}]
  %s5 = inlined_call_operand.hbm [shape: f32[256,128], index: 5, kind: output, shape index: {}]
  %s6 = sld [smem:[#allocation0]]
  $region53: #{tpu_custom_call.1} parent=0
    _
  %s8 = ssub.s32 1, %s6
  %s9 = scalar_select 0, %s8, %s6
  $region1: #{tpu_custom_call.1} parent=0
    #allocation2 [shape = 'u8[131072]{0}', space=vmem, size = 0x20000, scoped, tag = 'output window, operand 0']
    #allocation3 [shape = 's32[2]{0}', space=sflag, size = 0x8, scoped, tag = 'scoped memory for tpu_custom_call.1']
    %10 = vsyncpa [#allocation3], 0
    %s11 = scalar_lea.sflag [#allocation3], 1
    %12 = vsyncpa %s11, 0
    loop: start=0, step=1, limit=4
    $region2: #{tpu_custom_call.1} parent=1 // loop_pre_header
      _
    $region3: #{tpu_custom_call.1} parent=1 // loop_header
      %s14 = sphi 0, %s18
      %p15 = scmp.ge.s32.totalorder %s14, 4
      %s24 = sphi 0, %s26
      %s27 = sphi 0, %s24
      %s28 = sphi 0, %s27
      %s44 = sphi 0, %s28
      %s48 = sphi 0, %s48
      %s50 = sphi 0, %s48
      %s51 = sphi 0, %s50
      %s65 = sphi 0, %s51
      %s69 = sphi 0, %s69
      %s71 = sphi 0, %s69
      %s72 = sphi 0, %s71
      %s86 = sphi 0, %s72
      %s90 = sphi 0, %s90
      %s92 = sphi 0, %s90
      %s93 = sphi 0, %s92
      %s107 = sphi 0, %s93
      %s111 = sphi 0, %s111
      %s113 = sphi 0, %s111
      %s114 = sphi 0, %s113
      %s128 = sphi 0, %s114
      %s134 = sphi 0, %s136
      %s137 = sphi 0, %s134
      %s138 = sphi 0, %s137
      %s154 = sphi 0, %s138
    $region4: #{tpu_custom_call.1} parent=1 // loop_header_branch
      %17 = sbr.rel (%p15) target = $region8
    $region5: #{tpu_custom_call.1} parent=1 // loop_body
      %s19 = ssub.s32 %s14, 1
      %s20 = ssub.s32 %s14, 2
      %s21 = sadd.s32 %s14, 1
      %s22 = ssub.s32 %s14, %s21
      %p23 = scmp.eq.s32.totalorder %s22, 0
      %s25 = sadd.s32 %s24, 1
      %s26 = scalar_select %p23, %s24, %s25
      %p29 = pneg %p23
      %p30 = scmp.eq.s32.totalorder %s14, 1
      %p31 = por %p29, %p30
      %p32 = scmp.ne.s32.totalorder %s24, %s27
      %p33 = scmp.eq.s32.totalorder %s14, 0
      %p34 = por %p32, %p33
      %p35 = scmp.ne.s32.totalorder %s24, %s27
      %p36 = scmp.eq.s32.totalorder %s19, 1
      %p37 = por %p35, %p36
      %p38 = scmp.ne.s32.totalorder %s27, %s28
      %p39 = scmp.eq.s32.totalorder %s19, 0
      %p40 = por %p38, %p39
      %p41 = scmp.ne.s32.totalorder %s27, %s28
      %p42 = scmp.eq.s32.totalorder %s20, 1
      %p43 = por %p41, %p42
      %p45 = scmp.ne.s32.totalorder %s28, %s44
      %p46 = scmp.eq.s32.totalorder %s20, 0
      %p47 = por %p45, %p46
      %s49 = sadd.s32 %s48, 1
      %p52 = scmp.eq.s32.totalorder %s14, 1
      %p53 = scmp.ne.s32.totalorder %s48, %s50
      %p54 = scmp.eq.s32.totalorder %s14, 0
      %p55 = por %p53, %p54
      %p56 = scmp.ne.s32.totalorder %s48, %s50
      %p57 = scmp.eq.s32.totalorder %s19, 1
      %p58 = por %p56, %p57
      %p59 = scmp.ne.s32.totalorder %s50, %s51
      %p60 = scmp.eq.s32.totalorder %s19, 0
      %p61 = por %p59, %p60
      %p62 = scmp.ne.s32.totalorder %s50, %s51
      %p63 = scmp.eq.s32.totalorder %s20, 1
      %p64 = por %p62, %p63
      %p66 = scmp.ne.s32.totalorder %s51, %s65
      %p67 = scmp.eq.s32.totalorder %s20, 0
      %p68 = por %p66, %p67
      %s70 = sadd.s32 %s69, 1
      %p73 = scmp.eq.s32.totalorder %s14, 1
      %p74 = scmp.ne.s32.totalorder %s69, %s71
      %p75 = scmp.eq.s32.totalorder %s14, 0
      %p76 = por %p74, %p75
      %p77 = scmp.ne.s32.totalorder %s69, %s71
      %p78 = scmp.eq.s32.totalorder %s19, 1
      %p79 = por %p77, %p78
      %p80 = scmp.ne.s32.totalorder %s71, %s72
      %p81 = scmp.eq.s32.totalorder %s19, 0
      %p82 = por %p80, %p81
      %p83 = scmp.ne.s32.totalorder %s71, %s72
      %p84 = scmp.eq.s32.totalorder %s20, 1
      %p85 = por %p83, %p84
      %p87 = scmp.ne.s32.totalorder %s72, %s86
      %p88 = scmp.eq.s32.totalorder %s20, 0
      %p89 = por %p87, %p88
      %s91 = sadd.s32 %s90, 1
      %p94 = scmp.eq.s32.totalorder %s14, 1
      %p95 = scmp.ne.s32.totalorder %s90, %s92
      %p96 = scmp.eq.s32.totalorder %s14, 0
      %p97 = por %p95, %p96
      %p98 = scmp.ne.s32.totalorder %s90, %s92
      %p99 = scmp.eq.s32.totalorder %s19, 1
      %p100 = por %p98, %p99
      %p101 = scmp.ne.s32.totalorder %s92, %s93
      %p102 = scmp.eq.s32.totalorder %s19, 0
      %p103 = por %p101, %p102
      %p104 = scmp.ne.s32.totalorder %s92, %s93
      %p105 = scmp.eq.s32.totalorder %s20, 1
      %p106 = por %p104, %p105
      %p108 = scmp.ne.s32.totalorder %s93, %s107
      %p109 = scmp.eq.s32.totalorder %s20, 0
      %p110 = por %p108, %p109
      %s112 = sadd.s32 %s111, 1
      %p115 = scmp.eq.s32.totalorder %s14, 1
      %p116 = scmp.ne.s32.totalorder %s111, %s113
      %p117 = scmp.eq.s32.totalorder %s14, 0
      %p118 = por %p116, %p117
      %p119 = scmp.ne.s32.totalorder %s111, %s113
      %p120 = scmp.eq.s32.totalorder %s19, 1
      %p121 = por %p119, %p120
      %p122 = scmp.ne.s32.totalorder %s113, %s114
      %p123 = scmp.eq.s32.totalorder %s19, 0
      %p124 = por %p122, %p123
      %p125 = scmp.ne.s32.totalorder %s113, %s114
      %p126 = scmp.eq.s32.totalorder %s20, 1
      %p127 = por %p125, %p126
      %p129 = scmp.ne.s32.totalorder %s114, %s128
      %p130 = scmp.eq.s32.totalorder %s20, 0
      %p131 = por %p129, %p130
      %s132 = ssub.s32 %s14, %s21
      %p133 = scmp.eq.s32.totalorder %s132, 0
      %s135 = sadd.s32 %s134, 1
      %s136 = scalar_select %p133, %s134, %s135
      %p139 = pneg %p133
      %p140 = scmp.eq.s32.totalorder %s14, 1
      %p141 = por %p139, %p140
      %p142 = scmp.ne.s32.totalorder %s134, %s137
      %p143 = scmp.eq.s32.totalorder %s14, 0
      %p144 = por %p142, %p143
      %p145 = scmp.ne.s32.totalorder %s134, %s137
      %p146 = scmp.eq.s32.totalorder %s19, 1
      %p147 = por %p145, %p146
      %p148 = scmp.ne.s32.totalorder %s137, %s138
      %p149 = scmp.eq.s32.totalorder %s19, 0
      %p150 = por %p148, %p149
      %p151 = scmp.ne.s32.totalorder %s137, %s138
      %p152 = scmp.eq.s32.totalorder %s20, 1
      %p153 = por %p151, %p152
      %p155 = scmp.ne.s32.totalorder %s138, %s154
      %p156 = scmp.eq.s32.totalorder %s20, 0
      %p157 = por %p155, %p156
      %p158 = scmp.le.s32.totalorder 1, %s14
      %p159 = scmp.lt.s32.totalorder %s14, 3
      %p160 = pnand %p158, %p159
      %p161 = pneg %p160
      // Predicated region
      $region9: #{tpu_custom_call.1} parent=5 // pred_check
        _
      $region10: #{tpu_custom_call.1} parent=5 // pred_check_branch
        %163 = sbr.rel (%p160) target = $region12
      $region11: #{tpu_custom_call.1} parent=5 // pred_region
        %s164 = ssub.s32 %s14, 1
        // Predicated region
        $region13: #{tpu_custom_call.1} parent=11 // pred_check
          %p165 = pneg %p61
        $region14: #{tpu_custom_call.1} parent=11 // pred_check_branch
          %167 = sbr.rel (%p165) target = $region16
        $region15: #{tpu_custom_call.1} parent=11 // pred_region
          _
        $region16: #{tpu_custom_call.1} parent=11 // pred_fallthru
          _
        // Predicated region
        $region17: #{tpu_custom_call.1} parent=11 // pred_check
          %p168 = pneg %p82
        $region18: #{tpu_custom_call.1} parent=11 // pred_check_branch
          %170 = sbr.rel (%p168) target = $region20
        $region19: #{tpu_custom_call.1} parent=11 // pred_region
          _
        $region20: #{tpu_custom_call.1} parent=11 // pred_fallthru
          _
        // Predicated region
        $region21: #{tpu_custom_call.1} parent=11 // pred_check
          %p171 = pneg %p103
        $region22: #{tpu_custom_call.1} parent=11 // pred_check_branch
          %173 = sbr.rel (%p171) target = $region24
        $region23: #{tpu_custom_call.1} parent=11 // pred_region
          _
        $region24: #{tpu_custom_call.1} parent=11 // pred_fallthru
          _
        // Predicated region
        $region25: #{tpu_custom_call.1} parent=11 // pred_check
          %p174 = pneg %p124
        $region26: #{tpu_custom_call.1} parent=11 // pred_check_branch
          %176 = sbr.rel (%p174) target = $region28
        $region27: #{tpu_custom_call.1} parent=11 // pred_region
          _
        $region28: #{tpu_custom_call.1} parent=11 // pred_fallthru
          _
      $region12: #{tpu_custom_call.1} parent=5 // pred_fallthru
        _
      %p177 = scmp.lt.s32.totalorder %s14, 2
      // Predicated region
      $region29: #{tpu_custom_call.1} parent=5 // pred_check
        %p178 = pneg %p177
      $region30: #{tpu_custom_call.1} parent=5 // pred_check_branch
        %180 = sbr.rel (%p178) target = $region32
      $region31: #{tpu_custom_call.1} parent=5 // pred_region
        // Predicated region
        $region33: #{tpu_custom_call.1} parent=31 // pred_check
          %p181 = pneg %p34
        $region34: #{tpu_custom_call.1} parent=31 // pred_check_branch
          %183 = sbr.rel (%p181) target = $region36
        $region35: #{tpu_custom_call.1} parent=31 // pred_region
          %s184 = smul.u32 16, %s14
          %p185 = scmp.lt.s32.totalorder %s184, 31
          %s186 = scalar_select %p185, %s184, 31
          %s187 = smul.addr %s186, 8
          %s188 = scalar_lea.vmem %s0, %s187
          %s189 = smul.u32 16, %s14
        $region36: #{tpu_custom_call.1} parent=31 // pred_fallthru
          _
      $region32: #{tpu_custom_call.1} parent=5 // pred_fallthru
        _
      %p190 = scmp.le.s32.totalorder 1, %s14
      %p191 = scmp.lt.s32.totalorder %s14, 3
      %p192 = pnand %p190, %p191
      %p193 = pneg %p192
      // Predicated region
      $region37: #{tpu_custom_call.1} parent=5 // pred_check
        _
      $region38: #{tpu_custom_call.1} parent=5 // pred_check_branch
        %195 = sbr.rel (%p192) target = $region40
      $region39: #{tpu_custom_call.1} parent=5 // pred_region
        %s196 = ssub.s32 %s14, 1
        %s197 = smul.u32 16, %s19
        %p198 = scmp.lt.s32.totalorder %s197, 31
        %s199 = scalar_select %p198, %s197, 31
        %s200 = smul.addr %s199, 8
        %s201 = scalar_lea.vmem %s0, %s200
        %p202 = pneg %p40
        %p203 = pneg %p37
        %p204 = pneg %p61
        %p205 = pneg %p58
        %p206 = pneg %p82
        %p207 = pneg %p79
        %p208 = pneg %p103
        %p209 = pneg %p100
        %p210 = pneg %p124
        %p211 = pneg %p121
        %p212 = pneg %p150
        %p213 = pneg %p147
        %s214 = sand.u32 %s137, 1
        %s215 = scalar_lea.sflag [#allocation3], %s214
        %s216 = sand.u32 %s137, 1
        %s217 = smul.addr %s216, 128
        %s218 = scalar_lea.vmem [#allocation2], %s217
        %s219 = smul.u32 16, %s19
        %p220 = scmp.lt.s32.totalorder %s219, 31
        %s221 = scalar_select %p220, %s219, 31
        %s222 = smul.addr %s221, 8
        %s223 = scalar_lea.vmem %s0, %s222
        %s224 = smul.u32 16, %s19
        %s225 = smul.u32 16, %s19
        %v226 = vld [vmem:[%s223] sm:$0xff]
        %v227 = vld [vmem:[%s223 + $0x8] sm:$0xff]
        %v228 = vld [vmem:[%s223 + $0x10] sm:$0xff]
        %v229 = vld [vmem:[%s223 + $0x18] sm:$0xff]
        %v230 = vld [vmem:[%s223 + $0x20] sm:$0xff]
        %v231 = vld [vmem:[%s223 + $0x28] sm:$0xff]
        %v232 = vld [vmem:[%s223 + $0x30] sm:$0xff]
        %v233 = vld [vmem:[%s223 + $0x38] sm:$0xff]
        %v234 = vld [vmem:[%s223 + $0x40] sm:$0xff]
        %v235 = vld [vmem:[%s223 + $0x48] sm:$0xff]
        %v236 = vld [vmem:[%s223 + $0x50] sm:$0xff]
        %v237 = vld [vmem:[%s223 + $0x58] sm:$0xff]
        %v238 = vld [vmem:[%s223 + $0x60] sm:$0xff]
        %v239 = vld [vmem:[%s223 + $0x68] sm:$0xff]
        %v240 = vld [vmem:[%s223 + $0x70] sm:$0xff]
        %v241 = vld [vmem:[%s223 + $0x78] sm:$0xff]
        %v242 = vld [vmem:[%s1] sm:$0xff]
        %v243 = vld [vmem:[%s1 + $0x8] sm:$0xff]
        %v244 = vld [vmem:[%s1 + $0x10] sm:$0xff]
        %v245 = vld [vmem:[%s1 + $0x18] sm:$0xff]
        %v246 = vld [vmem:[%s1 + $0x20] sm:$0xff]
        %v247 = vld [vmem:[%s1 + $0x28] sm:$0xff]
        %v248 = vld [vmem:[%s1 + $0x30] sm:$0xff]
        %v249 = vld [vmem:[%s1 + $0x38] sm:$0xff]
        %v250 = vld [vmem:[%s2] sm:$0x1]
        %v252 = vlaneseq
        %v253 = vshrl.u32 %v252, 7
        %v254 = vsub.s32 0, %v253
        %v255 = vrot.slane %v250, %v254
        %vm257 = vcmask 523264
        %v259 = vsel %vm257, %v226, 0
        %v262 = vsel %vm257, %v227, 0
        %v265 = vsel %vm257, %v228, 0
        %v268 = vsel %vm257, %v229, 0
        %v271 = vsel %vm257, %v230, 0
        %v274 = vsel %vm257, %v231, 0
        %v277 = vsel %vm257, %v232, 0
        %v280 = vsel %vm257, %v233, 0
        %v283 = vsel %vm257, %v234, 0
        %v286 = vsel %vm257, %v235, 0
        %v289 = vsel %vm257, %v236, 0
        %v292 = vsel %vm257, %v237, 0
        %v295 = vsel %vm257, %v238, 0
        %v298 = vsel %vm257, %v239, 0
        %v301 = vsel %vm257, %v240, 0
        %v304 = vsel %vm257, %v241, 0
        %306 = vmatprep.subr.mxu0 0.0
        %307 = vmatpush1.msra.mxu0 0.0
        %308 = vmatprep.subr.mxu0 0.0
        %309 = vmatpush1.msra.mxu0 0.0
        %310 = vmatprep.subr.mxu0 0.0
        %311 = vmatpush1.msra.mxu0 0.0
        %312 = vmatprep.subr.mxu0 0.0
        %313 = vmatpush1.msra.mxu0 0.0
        %314 = vmatprep.subr.mxu0 0.0
        %315 = vmatpush1.msra.mxu0 0.0
        %316 = vmatprep.subr.mxu0 0.0
        %317 = vmatpush1.msra.mxu0 0.0
        %318 = vmatprep.subr.mxu0 0.0
        %319 = vmatpush1.msra.mxu0 0.0
        %320 = vmatprep.subr.mxu0 0.0
        %321 = vmatpush1.msra.mxu0 0.0
        %322 = vmatprep.subr.mxu0 0.0
        %323 = vmatpush1.msra.mxu0 %v249
        %324 = vmatprep.subr.mxu0 0.0
        %325 = vmatpush1.msra.mxu0 %v248
        %326 = vmatprep.subr.mxu0 0.0
        %327 = vmatpush1.msra.mxu0 %v247
        %328 = vmatprep.subr.mxu0 0.0
        %329 = vmatpush1.msra.mxu0 %v246
        %330 = vmatprep.subr.mxu0 0.0
        %331 = vmatpush1.msra.mxu0 %v245
        %332 = vmatprep.subr.mxu0 0.0
        %333 = vmatpush1.msra.mxu0 %v244
        %334 = vmatprep.subr.mxu0 0.0
        %335 = vmatpush1.msra.mxu0 %v243
        %336 = vmatprep.subr.mxu0 0.0
        %337 = vmatpush1.msra.mxu0 %v242
        %338 = vmatprep.subr.mxu0 0.0
        %339 = vmatpush2.msra.mxu0 0.0
        %340 = vmatprep.subr.mxu0 0.0
        %341 = vmatpush2.msra.mxu0 0.0
        %342 = vmatprep.subr.mxu0 0.0
        %343 = vmatpush2.msra.mxu0 0.0
        %344 = vmatprep.subr.mxu0 0.0
        %345 = vmatpush2.msra.mxu0 0.0
        %346 = vmatprep.subr.mxu0 0.0
        %347 = vmatpush2.msra.mxu0 0.0
        %348 = vmatprep.subr.mxu0 0.0
        %349 = vmatpush2.msra.mxu0 0.0
        %350 = vmatprep.subr.mxu0 0.0
        %351 = vmatpush2.msra.mxu0 0.0
        %352 = vmatprep.subr.mxu0 0.0
        %353 = vmatpush2.msra.mxu0 0.0
        %354 = vmatprep.subr.mxu0 0.0
        %355 = vmatpush2.msra.mxu0 0.0
        %356 = vmatprep.subr.mxu0 0.0
        %357 = vmatpush2.msra.mxu0 0.0
        %358 = vmatprep.subr.mxu0 0.0
        %359 = vmatpush2.msra.mxu0 0.0
        %360 = vmatprep.subr.mxu0 0.0
        %361 = vmatpush2.msra.mxu0 0.0
        %362 = vmatprep.subr.mxu0 0.0
        %363 = vmatpush2.msra.mxu0 0.0
        %364 = vmatprep.subr.mxu0 0.0
        %365 = vmatpush2.msra.mxu0 0.0
        %366 = vmatprep.subr.mxu0 0.0
        %367 = vmatpush2.msra.mxu0 0.0
        %368 = vmatprep.subr.mxu0 0.0
        %369 = vmatpush2.msra.mxu0 0.0
        %370 = vmatprep.mubr.f32.mxu0 0.0
        %371 = vmatmul.mubr.f32.gmra.mxu0 %v259
        %v372 = vpop.f32.mrf.mxu0
        %v373 = vadd.f32 %v255, %v372
        %v374 = vpop.f32.mrf.mxu0
        %375 = vmatprep.mubr.f32.mxu0 0.0
        %376 = vmatmul.mubr.f32.gmra.mxu0 %v262
        %v377 = vpop.f32.mrf.mxu0
        %v378 = vadd.f32 %v255, %v377
        %v379 = vpop.f32.mrf.mxu0
        %380 = vmatprep.mubr.f32.mxu0 0.0
        %381 = vmatmul.mubr.f32.gmra.mxu0 %v265
        %v382 = vpop.f32.mrf.mxu0
        %v383 = vadd.f32 %v255, %v382
        %v384 = vpop.f32.mrf.mxu0
        %385 = vmatprep.mubr.f32.mxu0 0.0
        %386 = vmatmul.mubr.f32.gmra.mxu0 %v268
        %v387 = vpop.f32.mrf.mxu0
        %v388 = vadd.f32 %v255, %v387
        %v389 = vpop.f32.mrf.mxu0
        %390 = vmatprep.mubr.f32.mxu0 0.0
        %391 = vmatmul.mubr.f32.gmra.mxu0 %v271
        %v392 = vpop.f32.mrf.mxu0
        %v393 = vadd.f32 %v255, %v392
        %v394 = vpop.f32.mrf.mxu0
        %395 = vmatprep.mubr.f32.mxu0 0.0
        %396 = vmatmul.mubr.f32.gmra.mxu0 %v274
        %v397 = vpop.f32.mrf.mxu0
        %v398 = vadd.f32 %v255, %v397
        %v399 = vpop.f32.mrf.mxu0
        %400 = vmatprep.mubr.f32.mxu0 0.0
        %401 = vmatmul.mubr.f32.gmra.mxu0 %v277
        %v402 = vpop.f32.mrf.mxu0
        %v403 = vadd.f32 %v255, %v402
        %v404 = vpop.f32.mrf.mxu0
        %405 = vmatprep.mubr.f32.mxu0 0.0
        %406 = vmatmul.mubr.f32.gmra.mxu0 %v280
        %v407 = vpop.f32.mrf.mxu0
        %v408 = vadd.f32 %v255, %v407
        %v409 = vpop.f32.mrf.mxu0
        %410 = vmatprep.mubr.f32.mxu0 0.0
        %411 = vmatmul.mubr.f32.gmra.mxu0 %v283
        %v412 = vpop.f32.mrf.mxu0
        %v413 = vadd.f32 %v255, %v412
        %v414 = vpop.f32.mrf.mxu0
        %415 = vmatprep.mubr.f32.mxu0 0.0
        %416 = vmatmul.mubr.f32.gmra.mxu0 %v286
        %v417 = vpop.f32.mrf.mxu0
        %v418 = vadd.f32 %v255, %v417
        %v419 = vpop.f32.mrf.mxu0
        %420 = vmatprep.mubr.f32.mxu0 0.0
        %421 = vmatmul.mubr.f32.gmra.mxu0 %v289
        %v422 = vpop.f32.mrf.mxu0
        %v423 = vadd.f32 %v255, %v422
        %v424 = vpop.f32.mrf.mxu0
        %425 = vmatprep.mubr.f32.mxu0 0.0
        %426 = vmatmul.mubr.f32.gmra.mxu0 %v292
        %v427 = vpop.f32.mrf.mxu0
        %v428 = vadd.f32 %v255, %v427
        %v429 = vpop.f32.mrf.mxu0
        %430 = vmatprep.mubr.f32.mxu0 0.0
        %431 = vmatmul.mubr.f32.gmra.mxu0 %v295
        %v432 = vpop.f32.mrf.mxu0
        %v433 = vadd.f32 %v255, %v432
        %v434 = vpop.f32.mrf.mxu0
        %435 = vmatprep.mubr.f32.mxu0 0.0
        %436 = vmatmul.mubr.f32.gmra.mxu0 %v298
        %v437 = vpop.f32.mrf.mxu0
        %v438 = vadd.f32 %v255, %v437
        %v439 = vpop.f32.mrf.mxu0
        %440 = vmatprep.mubr.f32.mxu0 0.0
        %441 = vmatmul.mubr.f32.gmra.mxu0 %v301
        %v442 = vpop.f32.mrf.mxu0
        %v443 = vadd.f32 %v255, %v442
        %v444 = vpop.f32.mrf.mxu0
        %445 = vmatprep.mubr.f32.mxu0 0.0
        %446 = vmatmul.mubr.f32.gmra.mxu0 %v304
        %v447 = vpop.f32.mrf.mxu0
        %v448 = vadd.f32 %v255, %v447
        %v449 = vpop.f32.mrf.mxu0
        %450 = vdwg.mxu0
        %v451 = vmax.f32 %v373, 0.0
        %v452 = vmax.f32 %v378, 0.0
        %v453 = vmax.f32 %v383, 0.0
        %v454 = vmax.f32 %v388, 0.0
        %v455 = vmax.f32 %v393, 0.0
        %v456 = vmax.f32 %v398, 0.0
        %v457 = vmax.f32 %v403, 0.0
        %v458 = vmax.f32 %v408, 0.0
        %v459 = vmax.f32 %v413, 0.0
        %v460 = vmax.f32 %v418, 0.0
        %v461 = vmax.f32 %v423, 0.0
        %v462 = vmax.f32 %v428, 0.0
        %v463 = vmax.f32 %v433, 0.0
        %v464 = vmax.f32 %v438, 0.0
        %v465 = vmax.f32 %v443, 0.0
        %v466 = vmax.f32 %v448, 0.0
        %v467 = vld [vmem:[%s3] sm:$0xff]
        %v468 = vld [vmem:[%s3 + $0x8] sm:$0xff]
        %v469 = vld [vmem:[%s3 + $0x10] sm:$0xff]
        %v470 = vld [vmem:[%s3 + $0x18] sm:$0xff]
        %v471 = vld [vmem:[%s3 + $0x20] sm:$0xff]
        %v472 = vld [vmem:[%s3 + $0x28] sm:$0xff]
        %v473 = vld [vmem:[%s3 + $0x30] sm:$0xff]
        %v474 = vld [vmem:[%s3 + $0x38] sm:$0xff]
        %v475 = vld [vmem:[%s3 + $0x40] sm:$0xff]
        %v476 = vld [vmem:[%s3 + $0x48] sm:$0xff]
        %v477 = vld [vmem:[%s3 + $0x50] sm:$0xff]
        %v478 = vld [vmem:[%s3 + $0x58] sm:$0xff]
        %v479 = vld [vmem:[%s3 + $0x60] sm:$0xff]
        %v480 = vld [vmem:[%s3 + $0x68] sm:$0xff]
        %v481 = vld [vmem:[%s3 + $0x70] sm:$0xff]
        %v482 = vld [vmem:[%s3 + $0x78] sm:$0xff]
        %v483 = vld [vmem:[%s4] sm:$0x1]
        %v485 = vlaneseq
        %v486 = vshrl.u32 %v485, 7
        %v487 = vsub.s32 0, %v486
        %v488 = vrot.slane %v483, %v487
        %490 = vmatprep.subr.mxu0 0.0
        %491 = vmatpush1.msra.mxu0 %v482
        %492 = vmatprep.subr.mxu0 0.0
        %493 = vmatpush1.msra.mxu0 %v481
        %494 = vmatprep.subr.mxu0 0.0
        %495 = vmatpush1.msra.mxu0 %v480
        %496 = vmatprep.subr.mxu0 0.0
        %497 = vmatpush1.msra.mxu0 %v479
        %498 = vmatprep.subr.mxu0 0.0
        %499 = vmatpush1.msra.mxu0 %v478
        %500 = vmatprep.subr.mxu0 0.0
        %501 = vmatpush1.msra.mxu0 %v477
        %502 = vmatprep.subr.mxu0 0.0
        %503 = vmatpush1.msra.mxu0 %v476
        %504 = vmatprep.subr.mxu0 0.0
        %505 = vmatpush1.msra.mxu0 %v475
        %506 = vmatprep.subr.mxu0 0.0
        %507 = vmatpush1.msra.mxu0 %v474
        %508 = vmatprep.subr.mxu0 0.0
        %509 = vmatpush1.msra.mxu0 %v473
        %510 = vmatprep.subr.mxu0 0.0
        %511 = vmatpush1.msra.mxu0 %v472
        %512 = vmatprep.subr.mxu0 0.0
        %513 = vmatpush1.msra.mxu0 %v471
        %514 = vmatprep.subr.mxu0 0.0
        %515 = vmatpush1.msra.mxu0 %v470
        %516 = vmatprep.subr.mxu0 0.0
        %517 = vmatpush1.msra.mxu0 %v469
        %518 = vmatprep.subr.mxu0 0.0
        %519 = vmatpush1.msra.mxu0 %v468
        %520 = vmatprep.subr.mxu0 0.0
        %521 = vmatpush1.msra.mxu0 %v467
        %522 = vmatprep.subr.mxu0 0.0
        %523 = vmatpush2.msra.mxu0 0.0
        %524 = vmatprep.subr.mxu0 0.0
        %525 = vmatpush2.msra.mxu0 0.0
        %526 = vmatprep.subr.mxu0 0.0
        %527 = vmatpush2.msra.mxu0 0.0
        %528 = vmatprep.subr.mxu0 0.0
        %529 = vmatpush2.msra.mxu0 0.0
        %530 = vmatprep.subr.mxu0 0.0
        %531 = vmatpush2.msra.mxu0 0.0
        %532 = vmatprep.subr.mxu0 0.0
        %533 = vmatpush2.msra.mxu0 0.0
        %534 = vmatprep.subr.mxu0 0.0
        %535 = vmatpush2.msra.mxu0 0.0
        %536 = vmatprep.subr.mxu0 0.0
        %537 = vmatpush2.msra.mxu0 0.0
        %538 = vmatprep.subr.mxu0 0.0
        %539 = vmatpush2.msra.mxu0 0.0
        %540 = vmatprep.subr.mxu0 0.0
        %541 = vmatpush2.msra.mxu0 0.0
        %542 = vmatprep.subr.mxu0 0.0
        %543 = vmatpush2.msra.mxu0 0.0
        %544 = vmatprep.subr.mxu0 0.0
        %545 = vmatpush2.msra.mxu0 0.0
        %546 = vmatprep.subr.mxu0 0.0
        %547 = vmatpush2.msra.mxu0 0.0
        %548 = vmatprep.subr.mxu0 0.0
        %549 = vmatpush2.msra.mxu0 0.0
        %550 = vmatprep.subr.mxu0 0.0
        %551 = vmatpush2.msra.mxu0 0.0
        %552 = vmatprep.subr.mxu0 0.0
        %553 = vmatpush2.msra.mxu0 0.0
        %554 = vmatprep.mubr.f32.mxu0 0.0
        %555 = vmatmul.mubr.f32.gmra.mxu0 %v451
        %v556 = vpop.f32.mrf.mxu0
        %v557 = vadd.f32 %v488, %v556
        %v558 = vpop.f32.mrf.mxu0
        %559 = vmatprep.mubr.f32.mxu0 0.0
        %560 = vmatmul.mubr.f32.gmra.mxu0 %v452
        %v561 = vpop.f32.mrf.mxu0
        %v562 = vadd.f32 %v488, %v561
        %v563 = vpop.f32.mrf.mxu0
        %564 = vmatprep.mubr.f32.mxu0 0.0
        %565 = vmatmul.mubr.f32.gmra.mxu0 %v453
        %v566 = vpop.f32.mrf.mxu0
        %v567 = vadd.f32 %v488, %v566
        %v568 = vpop.f32.mrf.mxu0
        %569 = vmatprep.mubr.f32.mxu0 0.0
        %570 = vmatmul.mubr.f32.gmra.mxu0 %v454
        %v571 = vpop.f32.mrf.mxu0
        %v572 = vadd.f32 %v488, %v571
        %v573 = vpop.f32.mrf.mxu0
        %574 = vmatprep.mubr.f32.mxu0 0.0
        %575 = vmatmul.mubr.f32.gmra.mxu0 %v455
        %v576 = vpop.f32.mrf.mxu0
        %v577 = vadd.f32 %v488, %v576
        %v578 = vpop.f32.mrf.mxu0
        %579 = vmatprep.mubr.f32.mxu0 0.0
        %580 = vmatmul.mubr.f32.gmra.mxu0 %v456
        %v581 = vpop.f32.mrf.mxu0
        %v582 = vadd.f32 %v488, %v581
        %v583 = vpop.f32.mrf.mxu0
        %584 = vmatprep.mubr.f32.mxu0 0.0
        %585 = vmatmul.mubr.f32.gmra.mxu0 %v457
        %v586 = vpop.f32.mrf.mxu0
        %v587 = vadd.f32 %v488, %v586
        %v588 = vpop.f32.mrf.mxu0
        %589 = vmatprep.mubr.f32.mxu0 0.0
        %590 = vmatmul.mubr.f32.gmra.mxu0 %v458
        %v591 = vpop.f32.mrf.mxu0
        %v592 = vadd.f32 %v488, %v591
        %v593 = vpop.f32.mrf.mxu0
        %594 = vmatprep.mubr.f32.mxu0 0.0
        %595 = vmatmul.mubr.f32.gmra.mxu0 %v459
        %v596 = vpop.f32.mrf.mxu0
        %v597 = vadd.f32 %v488, %v596
        %v598 = vpop.f32.mrf.mxu0
        %599 = vmatprep.mubr.f32.mxu0 0.0
        %600 = vmatmul.mubr.f32.gmra.mxu0 %v460
        %v601 = vpop.f32.mrf.mxu0
        %v602 = vadd.f32 %v488, %v601
        %v603 = vpop.f32.mrf.mxu0
        %604 = vmatprep.mubr.f32.mxu0 0.0
        %605 = vmatmul.mubr.f32.gmra.mxu0 %v461
        %v606 = vpop.f32.mrf.mxu0
        %v607 = vadd.f32 %v488, %v606
        %v608 = vpop.f32.mrf.mxu0
        %609 = vmatprep.mubr.f32.mxu0 0.0
        %610 = vmatmul.mubr.f32.gmra.mxu0 %v462
        %v611 = vpop.f32.mrf.mxu0
        %v612 = vadd.f32 %v488, %v611
        %v613 = vpop.f32.mrf.mxu0
        %614 = vmatprep.mubr.f32.mxu0 0.0
        %615 = vmatmul.mubr.f32.gmra.mxu0 %v463
        %v616 = vpop.f32.mrf.mxu0
        %v617 = vadd.f32 %v488, %v616
        %v618 = vpop.f32.mrf.mxu0
        %619 = vmatprep.mubr.f32.mxu0 0.0
        %620 = vmatmul.mubr.f32.gmra.mxu0 %v464
        %v621 = vpop.f32.mrf.mxu0
        %v622 = vadd.f32 %v488, %v621
        %v623 = vpop.f32.mrf.mxu0
        %624 = vmatprep.mubr.f32.mxu0 0.0
        %625 = vmatmul.mubr.f32.gmra.mxu0 %v465
        %v626 = vpop.f32.mrf.mxu0
        %v627 = vadd.f32 %v488, %v626
        %v628 = vpop.f32.mrf.mxu0
        %629 = vmatprep.mubr.f32.mxu0 0.0
        %630 = vmatmul.mubr.f32.gmra.mxu0 %v466
        %v631 = vpop.f32.mrf.mxu0
        %v632 = vadd.f32 %v488, %v631
        %v633 = vpop.f32.mrf.mxu0
        %634 = vdwg.mxu0
        %v635 = vmax.f32 %v557, 0.0
        %v636 = vmax.f32 %v562, 0.0
        %v637 = vmax.f32 %v567, 0.0
        %v638 = vmax.f32 %v572, 0.0
        %v639 = vmax.f32 %v577, 0.0
        %v640 = vmax.f32 %v582, 0.0
        %v641 = vmax.f32 %v587, 0.0
        %v642 = vmax.f32 %v592, 0.0
        %v643 = vmax.f32 %v597, 0.0
        %v644 = vmax.f32 %v602, 0.0
        %v645 = vmax.f32 %v607, 0.0
        %v646 = vmax.f32 %v612, 0.0
        %v647 = vmax.f32 %v617, 0.0
        %v648 = vmax.f32 %v622, 0.0
        %v649 = vmax.f32 %v627, 0.0
        %v650 = vmax.f32 %v632, 0.0
        %651 = vst [vmem:[%s218] sm:$0xff] %v635
        %652 = vst [vmem:[%s218 + $0x8] sm:$0xff] %v636
        %653 = vst [vmem:[%s218 + $0x10] sm:$0xff] %v637
        %654 = vst [vmem:[%s218 + $0x18] sm:$0xff] %v638
        %655 = vst [vmem:[%s218 + $0x20] sm:$0xff] %v639
        %656 = vst [vmem:[%s218 + $0x28] sm:$0xff] %v640
        %657 = vst [vmem:[%s218 + $0x30] sm:$0xff] %v641
        %658 = vst [vmem:[%s218 + $0x38] sm:$0xff] %v642
        %659 = vst [vmem:[%s218 + $0x40] sm:$0xff] %v643
        %660 = vst [vmem:[%s218 + $0x48] sm:$0xff] %v644
        %661 = vst [vmem:[%s218 + $0x50] sm:$0xff] %v645
        %662 = vst [vmem:[%s218 + $0x58] sm:$0xff] %v646
        %663 = vst [vmem:[%s218 + $0x60] sm:$0xff] %v647
        %664 = vst [vmem:[%s218 + $0x68] sm:$0xff] %v648
        %665 = vst [vmem:[%s218 + $0x70] sm:$0xff] %v649
        %666 = vst [vmem:[%s218 + $0x78] sm:$0xff] %v650
        %s667 = sand.u32 %s137, 1
        %s668 = scalar_lea.sflag [#allocation3], %s667
        %s669 = sand.u32 %s137, 1
        %s670 = smul.addr %s669, 128
        %s671 = scalar_lea.vmem [#allocation2], %s670
        // Predicated region
        $region41: #{tpu_custom_call.1} parent=39 // pred_check
          %p672 = pneg %p147
        $region42: #{tpu_custom_call.1} parent=39 // pred_check_branch
          %674 = sbr.rel (%p672) target = $region44
        $region43: #{tpu_custom_call.1} parent=39 // pred_region
          %s675 = smul.u32 16, %s19
          %s677 = ssub.s32 2048, 2048
          %678 = vsyncadd %s668, %s677
          %s679 = smul.addr %s675, 128
          %s680 = scalar_lea.hbm %s5, %s679
          %s681 = sshll.u32 %s671, 4
          %s682 = int_to_ptr.vmem [resolvable:$true] %s681
          %687 = dma.vmem_to_hbm [thread:$0]  %s682, 2048, %s680, %s668, 128, 128, 8
        $region44: #{tpu_custom_call.1} parent=39 // pred_fallthru
          _
      $region40: #{tpu_custom_call.1} parent=5 // pred_fallthru
        _
      %p688 = scmp.le.s32.totalorder 2, %s14
      // Predicated region
      $region45: #{tpu_custom_call.1} parent=5 // pred_check
        %p689 = pneg %p688
      $region46: #{tpu_custom_call.1} parent=5 // pred_check_branch
        %691 = sbr.rel (%p689) target = $region48
      $region47: #{tpu_custom_call.1} parent=5 // pred_region
        %s692 = ssub.s32 %s14, 2
        // Predicated region
        $region49: #{tpu_custom_call.1} parent=47 // pred_check
          %p693 = pneg %p153
        $region50: #{tpu_custom_call.1} parent=47 // pred_check_branch
          %695 = sbr.rel (%p693) target = $region52
        $region51: #{tpu_custom_call.1} parent=47 // pred_region
          %s696 = sand.u32 %s138, 1
          %s697 = scalar_lea.sflag [#allocation3], %s696
          %s698 = sand.u32 %s138, 1
          %s699 = smul.addr %s698, 128
          %s700 = scalar_lea.vmem [#allocation2], %s699
          %701 = dma.done %s697, 2048
        $region52: #{tpu_custom_call.1} parent=47 // pred_fallthru
          _
      $region48: #{tpu_custom_call.1} parent=5 // pred_fallthru
        _
    $region6: #{tpu_custom_call.1} parent=1 // loop_footer
      %s18 = sadd.s32 1, %s14
    $region7: #{tpu_custom_call.1} parent=1 // loop_footer_branch
      %13 = sbr.rel target = $region3
    $region8: #{tpu_custom_call.1} parent=1 // loop_exit
      _
    %702 = vsyncpa [#allocation3], 1
    %s703 = scalar_lea.sflag [#allocation3], 1
    %704 = vsyncpa %s703, 1

// kernel: tpu_custom_call.1
$region0: #{tpu_custom_call.1}
  #allocation0 [shape = 'u32[]', space=smem, size = 0x4, offset = 0x4, fixed_abs, tag = 'smem constant byte address 0x4 - core index']
  #allocation1 [shape = 'u32[144,128]{1,0:T(1,128)}', space=vmem, size = 0x12000, scoped, tag = 'internal scratch']
  %s0 = inlined_call_operand.vmem [shape: f32[256,64], index: 0, kind: input, shape index: {}]
  %s1 = inlined_call_operand.vmem [shape: f32[64,128], index: 1, kind: input, shape index: {}]
  %s2 = inlined_call_operand.vmem [shape: f32[1,128], index: 2, kind: input, shape index: {}]
  %s3 = inlined_call_operand.vmem [shape: f32[128,128], index: 3, kind: input, shape index: {}]
  %s4 = inlined_call_operand.vmem [shape: f32[1,128], index: 4, kind: input, shape index: {}]
  %s5 = inlined_call_operand.hbm [shape: f32[256,128], index: 5, kind: output, shape index: {}]
  %s6 = sld [smem:[#allocation0]]
  $region53: #{tpu_custom_call.1} parent=0
    _
  %s8 = ssub.s32 1, %s6
  %s9 = scalar_select 0, %s8, %s6
  $region1: #{tpu_custom_call.1} parent=0
    #allocation2 [shape = 'u8[131072]{0}', space=vmem, size = 0x20000, scoped, tag = 'output window, operand 0']
    #allocation3 [shape = 's32[2]{0}', space=sflag, size = 0x8, scoped, tag = 'scoped memory for tpu_custom_call.1']
    %10 = vsyncpa [#allocation3], 0
    %s11 = scalar_lea.sflag [#allocation3], 1
    %12 = vsyncpa %s11, 0
    loop: start=0, step=1, limit=4
    $region2: #{tpu_custom_call.1} parent=1 // loop_pre_header
      _
    $region3: #{tpu_custom_call.1} parent=1 // loop_header
      %s14 = sphi 0, %s18
      %p15 = scmp.ge.s32.totalorder %s14, 4
      %s24 = sphi 0, %s26
      %s27 = sphi 0, %s24
      %s28 = sphi 0, %s27
      %s44 = sphi 0, %s28
      %s48 = sphi 0, %s48
      %s50 = sphi 0, %s48
      %s51 = sphi 0, %s50
      %s65 = sphi 0, %s51
      %s69 = sphi 0, %s69
      %s71 = sphi 0, %s69
      %s72 = sphi 0, %s71
      %s86 = sphi 0, %s72
      %s90 = sphi 0, %s90
      %s92 = sphi 0, %s90
      %s93 = sphi 0, %s92
      %s107 = sphi 0, %s93
      %s111 = sphi 0, %s111
      %s113 = sphi 0, %s111
      %s114 = sphi 0, %s113
      %s128 = sphi 0, %s114
      %s134 = sphi 0, %s136
      %s137 = sphi 0, %s134
      %s138 = sphi 0, %s137
      %s154 = sphi 0, %s138
    $region4: #{tpu_custom_call.1} parent=1 // loop_header_branch
      %17 = sbr.rel (%p15) target = $region8
    $region5: #{tpu_custom_call.1} parent=1 // loop_body
      %s19 = ssub.s32 %s14, 1
      %s20 = ssub.s32 %s14, 2
      %s21 = sadd.s32 %s14, 1
      %s22 = ssub.s32 %s14, %s21
      %p23 = scmp.eq.s32.totalorder %s22, 0
      %s25 = sadd.s32 %s24, 1
      %s26 = scalar_select %p23, %s24, %s25
      %p29 = pneg %p23
      %p30 = scmp.eq.s32.totalorder %s14, 1
      %p31 = por %p29, %p30
      %p32 = scmp.ne.s32.totalorder %s24, %s27
      %p33 = scmp.eq.s32.totalorder %s14, 0
      %p34 = por %p32, %p33
      %p35 = scmp.ne.s32.totalorder %s24, %s27
      %p36 = scmp.eq.s32.totalorder %s19, 1
      %p37 = por %p35, %p36
      %p38 = scmp.ne.s32.totalorder %s27, %s28
      %p39 = scmp.eq.s32.totalorder %s19, 0
      %p40 = por %p38, %p39
      %p41 = scmp.ne.s32.totalorder %s27, %s28
      %p42 = scmp.eq.s32.totalorder %s20, 1
      %p43 = por %p41, %p42
      %p45 = scmp.ne.s32.totalorder %s28, %s44
      %p46 = scmp.eq.s32.totalorder %s20, 0
      %p47 = por %p45, %p46
      %s49 = sadd.s32 %s48, 1
      %p52 = scmp.eq.s32.totalorder %s14, 1
      %p53 = scmp.ne.s32.totalorder %s48, %s50
      %p54 = scmp.eq.s32.totalorder %s14, 0
      %p55 = por %p53, %p54
      %p56 = scmp.ne.s32.totalorder %s48, %s50
      %p57 = scmp.eq.s32.totalorder %s19, 1
      %p58 = por %p56, %p57
      %p59 = scmp.ne.s32.totalorder %s50, %s51
      %p60 = scmp.eq.s32.totalorder %s19, 0
      %p61 = por %p59, %p60
      %p62 = scmp.ne.s32.totalorder %s50, %s51
      %p63 = scmp.eq.s32.totalorder %s20, 1
      %p64 = por %p62, %p63
      %p66 = scmp.ne.s32.totalorder %s51, %s65
      %p67 = scmp.eq.s32.totalorder %s20, 0
      %p68 = por %p66, %p67
      %s70 = sadd.s32 %s69, 1
      %p73 = scmp.eq.s32.totalorder %s14, 1
      %p74 = scmp.ne.s32.totalorder %s69, %s71
      %p75 = scmp.eq.s32.totalorder %s14, 0
      %p76 = por %p74, %p75
      %p77 = scmp.ne.s32.totalorder %s69, %s71
      %p78 = scmp.eq.s32.totalorder %s19, 1
      %p79 = por %p77, %p78
      %p80 = scmp.ne.s32.totalorder %s71, %s72
      %p81 = scmp.eq.s32.totalorder %s19, 0
      %p82 = por %p80, %p81
      %p83 = scmp.ne.s32.totalorder %s71, %s72
      %p84 = scmp.eq.s32.totalorder %s20, 1
      %p85 = por %p83, %p84
      %p87 = scmp.ne.s32.totalorder %s72, %s86
      %p88 = scmp.eq.s32.totalorder %s20, 0
      %p89 = por %p87, %p88
      %s91 = sadd.s32 %s90, 1
      %p94 = scmp.eq.s32.totalorder %s14, 1
      %p95 = scmp.ne.s32.totalorder %s90, %s92
      %p96 = scmp.eq.s32.totalorder %s14, 0
      %p97 = por %p95, %p96
      %p98 = scmp.ne.s32.totalorder %s90, %s92
      %p99 = scmp.eq.s32.totalorder %s19, 1
      %p100 = por %p98, %p99
      %p101 = scmp.ne.s32.totalorder %s92, %s93
      %p102 = scmp.eq.s32.totalorder %s19, 0
      %p103 = por %p101, %p102
      %p104 = scmp.ne.s32.totalorder %s92, %s93
      %p105 = scmp.eq.s32.totalorder %s20, 1
      %p106 = por %p104, %p105
      %p108 = scmp.ne.s32.totalorder %s93, %s107
      %p109 = scmp.eq.s32.totalorder %s20, 0
      %p110 = por %p108, %p109
      %s112 = sadd.s32 %s111, 1
      %p115 = scmp.eq.s32.totalorder %s14, 1
      %p116 = scmp.ne.s32.totalorder %s111, %s113
      %p117 = scmp.eq.s32.totalorder %s14, 0
      %p118 = por %p116, %p117
      %p119 = scmp.ne.s32.totalorder %s111, %s113
      %p120 = scmp.eq.s32.totalorder %s19, 1
      %p121 = por %p119, %p120
      %p122 = scmp.ne.s32.totalorder %s113, %s114
      %p123 = scmp.eq.s32.totalorder %s19, 0
      %p124 = por %p122, %p123
      %p125 = scmp.ne.s32.totalorder %s113, %s114
      %p126 = scmp.eq.s32.totalorder %s20, 1
      %p127 = por %p125, %p126
      %p129 = scmp.ne.s32.totalorder %s114, %s128
      %p130 = scmp.eq.s32.totalorder %s20, 0
      %p131 = por %p129, %p130
      %s132 = ssub.s32 %s14, %s21
      %p133 = scmp.eq.s32.totalorder %s132, 0
      %s135 = sadd.s32 %s134, 1
      %s136 = scalar_select %p133, %s134, %s135
      %p139 = pneg %p133
      %p140 = scmp.eq.s32.totalorder %s14, 1
      %p141 = por %p139, %p140
      %p142 = scmp.ne.s32.totalorder %s134, %s137
      %p143 = scmp.eq.s32.totalorder %s14, 0
      %p144 = por %p142, %p143
      %p145 = scmp.ne.s32.totalorder %s134, %s137
      %p146 = scmp.eq.s32.totalorder %s19, 1
      %p147 = por %p145, %p146
      %p148 = scmp.ne.s32.totalorder %s137, %s138
      %p149 = scmp.eq.s32.totalorder %s19, 0
      %p150 = por %p148, %p149
      %p151 = scmp.ne.s32.totalorder %s137, %s138
      %p152 = scmp.eq.s32.totalorder %s20, 1
      %p153 = por %p151, %p152
      %p155 = scmp.ne.s32.totalorder %s138, %s154
      %p156 = scmp.eq.s32.totalorder %s20, 0
      %p157 = por %p155, %p156
      %p158 = scmp.le.s32.totalorder 1, %s14
      %p159 = scmp.lt.s32.totalorder %s14, 3
      %p160 = pnand %p158, %p159
      %p161 = pneg %p160
      // Predicated region
      $region9: #{tpu_custom_call.1} parent=5 // pred_check
        _
      $region10: #{tpu_custom_call.1} parent=5 // pred_check_branch
        %163 = sbr.rel (%p160) target = $region12
      $region11: #{tpu_custom_call.1} parent=5 // pred_region
        %s164 = ssub.s32 %s14, 1
        // Predicated region
        $region13: #{tpu_custom_call.1} parent=11 // pred_check
          %p165 = pneg %p61
        $region14: #{tpu_custom_call.1} parent=11 // pred_check_branch
          %167 = sbr.rel (%p165) target = $region16
        $region15: #{tpu_custom_call.1} parent=11 // pred_region
          _
        $region16: #{tpu_custom_call.1} parent=11 // pred_fallthru
          _
        // Predicated region
        $region17: #{tpu_custom_call.1} parent=11 // pred_check
          %p168 = pneg %p82
        $region18: #{tpu_custom_call.1} parent=11 // pred_check_branch
          %170 = sbr.rel (%p168) target = $region20
        $region19: #{tpu_custom_call.1} parent=11 // pred_region
          _
        $region20: #{tpu_custom_call.1} parent=11 // pred_fallthru
          _
        // Predicated region
        $region21: #{tpu_custom_call.1} parent=11 // pred_check
          %p171 = pneg %p103
        $region22: #{tpu_custom_call.1} parent=11 // pred_check_branch
          %173 = sbr.rel (%p171) target = $region24
        $region23: #{tpu_custom_call.1} parent=11 // pred_region
          _
        $region24: #{tpu_custom_call.1} parent=11 // pred_fallthru
          _
        // Predicated region
        $region25: #{tpu_custom_call.1} parent=11 // pred_check
          %p174 = pneg %p124
        $region26: #{tpu_custom_call.1} parent=11 // pred_check_branch
          %176 = sbr.rel (%p174) target = $region28
        $region27: #{tpu_custom_call.1} parent=11 // pred_region
          _
        $region28: #{tpu_custom_call.1} parent=11 // pred_fallthru
          _
      $region12: #{tpu_custom_call.1} parent=5 // pred_fallthru
        _
      %p177 = scmp.lt.s32.totalorder %s14, 2
      // Predicated region
      $region29: #{tpu_custom_call.1} parent=5 // pred_check
        %p178 = pneg %p177
      $region30: #{tpu_custom_call.1} parent=5 // pred_check_branch
        %180 = sbr.rel (%p178) target = $region32
      $region31: #{tpu_custom_call.1} parent=5 // pred_region
        // Predicated region
        $region33: #{tpu_custom_call.1} parent=31 // pred_check
          %p181 = pneg %p34
        $region34: #{tpu_custom_call.1} parent=31 // pred_check_branch
          %183 = sbr.rel (%p181) target = $region36
        $region35: #{tpu_custom_call.1} parent=31 // pred_region
          %s184 = smul.u32 16, %s14
          %p185 = scmp.lt.s32.totalorder %s184, 31
          %s186 = scalar_select %p185, %s184, 31
          %s187 = smul.addr %s186, 8
          %s188 = scalar_lea.vmem %s0, %s187
          %s189 = smul.u32 16, %s14
        $region36: #{tpu_custom_call.1} parent=31 // pred_fallthru
          _
      $region32: #{tpu_custom_call.1} parent=5 // pred_fallthru
        _
      %p190 = scmp.le.s32.totalorder 1, %s14
      %p191 = scmp.lt.s32.totalorder %s14, 3
      %p192 = pnand %p190, %p191
      %p193 = pneg %p192
      // Predicated region
      $region37: #{tpu_custom_call.1} parent=5 // pred_check
        _
      $region38: #{tpu_custom_call.1} parent=5 // pred_check_branch
        %195 = sbr.rel (%p192) target = $region40
      $region39: #{tpu_custom_call.1} parent=5 // pred_region
        %s196 = ssub.s32 %s14, 1
        %s197 = smul.u32 16, %s19
        %p198 = scmp.lt.s32.totalorder %s197, 31
        %s199 = scalar_select %p198, %s197, 31
        %s200 = smul.addr %s199, 8
        %s201 = scalar_lea.vmem %s0, %s200
        %p202 = pneg %p40
        %p203 = pneg %p37
        %p204 = pneg %p61
        %p205 = pneg %p58
        %p206 = pneg %p82
        %p207 = pneg %p79
        %p208 = pneg %p103
        %p209 = pneg %p100
        %p210 = pneg %p124
        %p211 = pneg %p121
        %p212 = pneg %p150
        %p213 = pneg %p147
        %s214 = sand.u32 %s137, 1
        %s215 = scalar_lea.sflag [#allocation3], %s214
        %s216 = sand.u32 %s137, 1
        %s217 = smul.addr %s216, 128
        %s218 = scalar_lea.vmem [#allocation2], %s217
        %s219 = smul.u32 16, %s19
        %p220 = scmp.lt.s32.totalorder %s219, 31
        %s221 = scalar_select %p220, %s219, 31
        %s222 = smul.addr %s221, 8
        %s223 = scalar_lea.vmem %s0, %s222
        %s224 = smul.u32 16, %s19
        %s225 = smul.u32 16, %s19
        %v226 = vld [vmem:[%s223] sm:$0xff]
        %v227 = vld [vmem:[%s223 + $0x8] sm:$0xff]
        %v228 = vld [vmem:[%s223 + $0x10] sm:$0xff]
        %v229 = vld [vmem:[%s223 + $0x18] sm:$0xff]
        %v230 = vld [vmem:[%s223 + $0x20] sm:$0xff]
        %v231 = vld [vmem:[%s223 + $0x28] sm:$0xff]
        %v232 = vld [vmem:[%s223 + $0x30] sm:$0xff]
        %v233 = vld [vmem:[%s223 + $0x38] sm:$0xff]
        %v234 = vld [vmem:[%s223 + $0x40] sm:$0xff]
        %v235 = vld [vmem:[%s223 + $0x48] sm:$0xff]
        %v236 = vld [vmem:[%s223 + $0x50] sm:$0xff]
        %v237 = vld [vmem:[%s223 + $0x58] sm:$0xff]
        %v238 = vld [vmem:[%s223 + $0x60] sm:$0xff]
        %v239 = vld [vmem:[%s223 + $0x68] sm:$0xff]
        %v240 = vld [vmem:[%s223 + $0x70] sm:$0xff]
        %v241 = vld [vmem:[%s223 + $0x78] sm:$0xff]
        %v242 = vld [vmem:[%s1] sm:$0xff]
        %v243 = vld [vmem:[%s1 + $0x8] sm:$0xff]
        %v244 = vld [vmem:[%s1 + $0x10] sm:$0xff]
        %v245 = vld [vmem:[%s1 + $0x18] sm:$0xff]
        %v246 = vld [vmem:[%s1 + $0x20] sm:$0xff]
        %v247 = vld [vmem:[%s1 + $0x28] sm:$0xff]
        %v248 = vld [vmem:[%s1 + $0x30] sm:$0xff]
        %v249 = vld [vmem:[%s1 + $0x38] sm:$0xff]
        %v250 = vld [vmem:[%s2] sm:$0x1]
        %v252 = vlaneseq
        %v253 = vshrl.u32 %v252, 7
        %v254 = vsub.s32 0, %v253
        %v255 = vrot.slane %v250, %v254
        %vm257 = vcmask 523264
        %v259 = vsel %vm257, %v226, 0
        %v262 = vsel %vm257, %v227, 0
        %v265 = vsel %vm257, %v228, 0
        %v268 = vsel %vm257, %v229, 0
        %v271 = vsel %vm257, %v230, 0
        %v274 = vsel %vm257, %v231, 0
        %v277 = vsel %vm257, %v232, 0
        %v280 = vsel %vm257, %v233, 0
        %v283 = vsel %vm257, %v234, 0
        %v286 = vsel %vm257, %v235, 0
        %v289 = vsel %vm257, %v236, 0
        %v292 = vsel %vm257, %v237, 0
        %v295 = vsel %vm257, %v238, 0
        %v298 = vsel %vm257, %v239, 0
        %v301 = vsel %vm257, %v240, 0
        %v304 = vsel %vm257, %v241, 0
        %306 = vmatprep.subr.mxu0 0.0
        %307 = vmatpush1.msra.mxu0 0.0
        %308 = vmatprep.subr.mxu0 0.0
        %309 = vmatpush1.msra.mxu0 0.0
        %310 = vmatprep.subr.mxu0 0.0
        %311 = vmatpush1.msra.mxu0 0.0
        %312 = vmatprep.subr.mxu0 0.0
        %313 = vmatpush1.msra.mxu0 0.0
        %314 = vmatprep.subr.mxu0 0.0
        %315 = vmatpush1.msra.mxu0 0.0
        %316 = vmatprep.subr.mxu0 0.0
        %317 = vmatpush1.msra.mxu0 0.0
        %318 = vmatprep.subr.mxu0 0.0
        %319 = vmatpush1.msra.mxu0 0.0
        %320 = vmatprep.subr.mxu0 0.0
        %321 = vmatpush1.msra.mxu0 0.0
        %322 = vmatprep.subr.mxu0 0.0
        %323 = vmatpush1.msra.mxu0 %v249
        %324 = vmatprep.subr.mxu0 0.0
        %325 = vmatpush1.msra.mxu0 %v248
        %326 = vmatprep.subr.mxu0 0.0
        %327 = vmatpush1.msra.mxu0 %v247
        %328 = vmatprep.subr.mxu0 0.0
        %329 = vmatpush1.msra.mxu0 %v246
        %330 = vmatprep.subr.mxu0 0.0
        %331 = vmatpush1.msra.mxu0 %v245
        %332 = vmatprep.subr.mxu0 0.0
        %333 = vmatpush1.msra.mxu0 %v244
        %334 = vmatprep.subr.mxu0 0.0
        %335 = vmatpush1.msra.mxu0 %v243
        %336 = vmatprep.subr.mxu0 0.0
        %337 = vmatpush1.msra.mxu0 %v242
        %338 = vmatprep.subr.mxu0 0.0
        %339 = vmatpush2.msra.mxu0 0.0
        %340 = vmatprep.subr.mxu0 0.0
        %341 = vmatpush2.msra.mxu0 0.0
        %342 = vmatprep.subr.mxu0 0.0
        %343 = vmatpush2.msra.mxu0 0.0
        %344 = vmatprep.subr.mxu0 0.0
        %345 = vmatpush2.msra.mxu0 0.0
        %346 = vmatprep.subr.mxu0 0.0
        %347 = vmatpush2.msra.mxu0 0.0
        %348 = vmatprep.subr.mxu0 0.0
        %349 = vmatpush2.msra.mxu0 0.0
        %350 = vmatprep.subr.mxu0 0.0
        %351 = vmatpush2.msra.mxu0 0.0
        %352 = vmatprep.subr.mxu0 0.0
        %353 = vmatpush2.msra.mxu0 0.0
        %354 = vmatprep.subr.mxu0 0.0
        %355 = vmatpush2.msra.mxu0 0.0
        %356 = vmatprep.subr.mxu0 0.0
        %357 = vmatpush2.msra.mxu0 0.0
        %358 = vmatprep.subr.mxu0 0.0
        %359 = vmatpush2.msra.mxu0 0.0
        %360 = vmatprep.subr.mxu0 0.0
        %361 = vmatpush2.msra.mxu0 0.0
        %362 = vmatprep.subr.mxu0 0.0
        %363 = vmatpush2.msra.mxu0 0.0
        %364 = vmatprep.subr.mxu0 0.0
        %365 = vmatpush2.msra.mxu0 0.0
        %366 = vmatprep.subr.mxu0 0.0
        %367 = vmatpush2.msra.mxu0 0.0
        %368 = vmatprep.subr.mxu0 0.0
        %369 = vmatpush2.msra.mxu0 0.0
        %370 = vmatprep.mubr.f32.mxu0 0.0
        %371 = vmatmul.mubr.f32.gmra.mxu0 %v259
        %v372 = vpop.f32.mrf.mxu0
        %v373 = vadd.f32 %v255, %v372
        %v374 = vpop.f32.mrf.mxu0
        %375 = vmatprep.mubr.f32.mxu0 0.0
        %376 = vmatmul.mubr.f32.gmra.mxu0 %v262
        %v377 = vpop.f32.mrf.mxu0
        %v378 = vadd.f32 %v255, %v377
        %v379 = vpop.f32.mrf.mxu0
        %380 = vmatprep.mubr.f32.mxu0 0.0
        %381 = vmatmul.mubr.f32.gmra.mxu0 %v265
        %v382 = vpop.f32.mrf.mxu0
        %v383 = vadd.f32 %v255, %v382
        %v384 = vpop.f32.mrf.mxu0
        %385 = vmatprep.mubr.f32.mxu0 0.0
        %386 = vmatmul.mubr.f32.gmra.mxu0 %v268
        %v387 = vpop.f32.mrf.mxu0
        %v388 = vadd.f32 %v255, %v387
        %v389 = vpop.f32.mrf.mxu0
        %390 = vmatprep.mubr.f32.mxu0 0.0
        %391 = vmatmul.mubr.f32.gmra.mxu0 %v271
        %v392 = vpop.f32.mrf.mxu0
        %v393 = vadd.f32 %v255, %v392
        %v394 = vpop.f32.mrf.mxu0
        %395 = vmatprep.mubr.f32.mxu0 0.0
        %396 = vmatmul.mubr.f32.gmra.mxu0 %v274
        %v397 = vpop.f32.mrf.mxu0
        %v398 = vadd.f32 %v255, %v397
        %v399 = vpop.f32.mrf.mxu0
        %400 = vmatprep.mubr.f32.mxu0 0.0
        %401 = vmatmul.mubr.f32.gmra.mxu0 %v277
        %v402 = vpop.f32.mrf.mxu0
        %v403 = vadd.f32 %v255, %v402
        %v404 = vpop.f32.mrf.mxu0
        %405 = vmatprep.mubr.f32.mxu0 0.0
        %406 = vmatmul.mubr.f32.gmra.mxu0 %v280
        %v407 = vpop.f32.mrf.mxu0
        %v408 = vadd.f32 %v255, %v407
        %v409 = vpop.f32.mrf.mxu0
        %410 = vmatprep.mubr.f32.mxu0 0.0
        %411 = vmatmul.mubr.f32.gmra.mxu0 %v283
        %v412 = vpop.f32.mrf.mxu0
        %v413 = vadd.f32 %v255, %v412
        %v414 = vpop.f32.mrf.mxu0
        %415 = vmatprep.mubr.f32.mxu0 0.0
        %416 = vmatmul.mubr.f32.gmra.mxu0 %v286
        %v417 = vpop.f32.mrf.mxu0
        %v418 = vadd.f32 %v255, %v417
        %v419 = vpop.f32.mrf.mxu0
        %420 = vmatprep.mubr.f32.mxu0 0.0
        %421 = vmatmul.mubr.f32.gmra.mxu0 %v289
        %v422 = vpop.f32.mrf.mxu0
        %v423 = vadd.f32 %v255, %v422
        %v424 = vpop.f32.mrf.mxu0
        %425 = vmatprep.mubr.f32.mxu0 0.0
        %426 = vmatmul.mubr.f32.gmra.mxu0 %v292
        %v427 = vpop.f32.mrf.mxu0
        %v428 = vadd.f32 %v255, %v427
        %v429 = vpop.f32.mrf.mxu0
        %430 = vmatprep.mubr.f32.mxu0 0.0
        %431 = vmatmul.mubr.f32.gmra.mxu0 %v295
        %v432 = vpop.f32.mrf.mxu0
        %v433 = vadd.f32 %v255, %v432
        %v434 = vpop.f32.mrf.mxu0
        %435 = vmatprep.mubr.f32.mxu0 0.0
        %436 = vmatmul.mubr.f32.gmra.mxu0 %v298
        %v437 = vpop.f32.mrf.mxu0
        %v438 = vadd.f32 %v255, %v437
        %v439 = vpop.f32.mrf.mxu0
        %440 = vmatprep.mubr.f32.mxu0 0.0
        %441 = vmatmul.mubr.f32.gmra.mxu0 %v301
        %v442 = vpop.f32.mrf.mxu0
        %v443 = vadd.f32 %v255, %v442
        %v444 = vpop.f32.mrf.mxu0
        %445 = vmatprep.mubr.f32.mxu0 0.0
        %446 = vmatmul.mubr.f32.gmra.mxu0 %v304
        %v447 = vpop.f32.mrf.mxu0
        %v448 = vadd.f32 %v255, %v447
        %v449 = vpop.f32.mrf.mxu0
        %450 = vdwg.mxu0
        %v451 = vmax.f32 %v373, 0.0
        %v452 = vmax.f32 %v378, 0.0
        %v453 = vmax.f32 %v383, 0.0
        %v454 = vmax.f32 %v388, 0.0
        %v455 = vmax.f32 %v393, 0.0
        %v456 = vmax.f32 %v398, 0.0
        %v457 = vmax.f32 %v403, 0.0
        %v458 = vmax.f32 %v408, 0.0
        %v459 = vmax.f32 %v413, 0.0
        %v460 = vmax.f32 %v418, 0.0
        %v461 = vmax.f32 %v423, 0.0
        %v462 = vmax.f32 %v428, 0.0
        %v463 = vmax.f32 %v433, 0.0
        %v464 = vmax.f32 %v438, 0.0
        %v465 = vmax.f32 %v443, 0.0
        %v466 = vmax.f32 %v448, 0.0
        %v467 = vld [vmem:[%s3] sm:$0xff]
        %v468 = vld [vmem:[%s3 + $0x8] sm:$0xff]
        %v469 = vld [vmem:[%s3 + $0x10] sm:$0xff]
        %v470 = vld [vmem:[%s3 + $0x18] sm:$0xff]
        %v471 = vld [vmem:[%s3 + $0x20] sm:$0xff]
        %v472 = vld [vmem:[%s3 + $0x28] sm:$0xff]
        %v473 = vld [vmem:[%s3 + $0x30] sm:$0xff]
        %v474 = vld [vmem:[%s3 + $0x38] sm:$0xff]
        %v475 = vld [vmem:[%s3 + $0x40] sm:$0xff]
        %v476 = vld [vmem:[%s3 + $0x48] sm:$0xff]
        %v477 = vld [vmem:[%s3 + $0x50] sm:$0xff]
        %v478 = vld [vmem:[%s3 + $0x58] sm:$0xff]
        %v479 = vld [vmem:[%s3 + $0x60] sm:$0xff]
        %v480 = vld [vmem:[%s3 + $0x68] sm:$0xff]
        %v481 = vld [vmem:[%s3 + $0x70] sm:$0xff]
        %v482 = vld [vmem:[%s3 + $0x78] sm:$0xff]
        %v483 = vld [vmem:[%s4] sm:$0x1]
        %v485 = vlaneseq
        %v486 = vshrl.u32 %v485, 7
        %v487 = vsub.s32 0, %v486
        %v488 = vrot.slane %v483, %v487
        %490 = vmatprep.subr.mxu0 0.0
        %491 = vmatpush1.msra.mxu0 %v482
        %492 = vmatprep.subr.mxu0 0.0
        %493 = vmatpush1.msra.mxu0 %v481
        %494 = vmatprep.subr.mxu0 0.0
        %495 = vmatpush1.msra.mxu0 %v480
        %496 = vmatprep.subr.mxu0 0.0
        %497 = vmatpush1.msra.mxu0 %v479
        %498 = vmatprep.subr.mxu0 0.0
        %499 = vmatpush1.msra.mxu0 %v478
        %500 = vmatprep.subr.mxu0 0.0
        %501 = vmatpush1.msra.mxu0 %v477
        %502 = vmatprep.subr.mxu0 0.0
        %503 = vmatpush1.msra.mxu0 %v476
        %504 = vmatprep.subr.mxu0 0.0
        %505 = vmatpush1.msra.mxu0 %v475
        %506 = vmatprep.subr.mxu0 0.0
        %507 = vmatpush1.msra.mxu0 %v474
        %508 = vmatprep.subr.mxu0 0.0
        %509 = vmatpush1.msra.mxu0 %v473
        %510 = vmatprep.subr.mxu0 0.0
        %511 = vmatpush1.msra.mxu0 %v472
        %512 = vmatprep.subr.mxu0 0.0
        %513 = vmatpush1.msra.mxu0 %v471
        %514 = vmatprep.subr.mxu0 0.0
        %515 = vmatpush1.msra.mxu0 %v470
        %516 = vmatprep.subr.mxu0 0.0
        %517 = vmatpush1.msra.mxu0 %v469
        %518 = vmatprep.subr.mxu0 0.0
        %519 = vmatpush1.msra.mxu0 %v468
        %520 = vmatprep.subr.mxu0 0.0
        %521 = vmatpush1.msra.mxu0 %v467
        %522 = vmatprep.subr.mxu0 0.0
        %523 = vmatpush2.msra.mxu0 0.0
        %524 = vmatprep.subr.mxu0 0.0
        %525 = vmatpush2.msra.mxu0 0.0
        %526 = vmatprep.subr.mxu0 0.0
        %527 = vmatpush2.msra.mxu0 0.0
        %528 = vmatprep.subr.mxu0 0.0
        %529 = vmatpush2.msra.mxu0 0.0
        %530 = vmatprep.subr.mxu0 0.0
        %531 = vmatpush2.msra.mxu0 0.0
        %532 = vmatprep.subr.mxu0 0.0
        %533 = vmatpush2.msra.mxu0 0.0
        %534 = vmatprep.subr.mxu0 0.0
        %535 = vmatpush2.msra.mxu0 0.0
        %536 = vmatprep.subr.mxu0 0.0
        %537 = vmatpush2.msra.mxu0 0.0
        %538 = vmatprep.subr.mxu0 0.0
        %539 = vmatpush2.msra.mxu0 0.0
        %540 = vmatprep.subr.mxu0 0.0
        %541 = vmatpush2.msra.mxu0 0.0
        %542 = vmatprep.subr.mxu0 0.0
        %543 = vmatpush2.msra.mxu0 0.0
        %544 = vmatprep.subr.mxu0 0.0
        %545 = vmatpush2.msra.mxu0 0.0
        %546 = vmatprep.subr.mxu0 0.0
        %547 = vmatpush2.msra.mxu0 0.0
        %548 = vmatprep.subr.mxu0 0.0
        %549 = vmatpush2.msra.mxu0 0.0
        %550 = vmatprep.subr.mxu0 0.0
        %551 = vmatpush2.msra.mxu0 0.0
        %552 = vmatprep.subr.mxu0 0.0
        %553 = vmatpush2.msra.mxu0 0.0
        %554 = vmatprep.mubr.f32.mxu0 0.0
        %555 = vmatmul.mubr.f32.gmra.mxu0 %v451
        %v556 = vpop.f32.mrf.mxu0
        %v557 = vadd.f32 %v488, %v556
        %v558 = vpop.f32.mrf.mxu0
        %559 = vmatprep.mubr.f32.mxu0 0.0
        %560 = vmatmul.mubr.f32.gmra.mxu0 %v452
        %v561 = vpop.f32.mrf.mxu0
        %v562 = vadd.f32 %v488, %v561
        %v563 = vpop.f32.mrf.mxu0
        %564 = vmatprep.mubr.f32.mxu0 0.0
        %565 = vmatmul.mubr.f32.gmra.mxu0 %v453
        %v566 = vpop.f32.mrf.mxu0
        %v567 = vadd.f32 %v488, %v566
        %v568 = vpop.f32.mrf.mxu0
        %569 = vmatprep.mubr.f32.mxu0 0.0
        %570 = vmatmul.mubr.f32.gmra.mxu0 %v454
        %v571 = vpop.f32.mrf.mxu0
        %v572 = vadd.f32 %v488, %v571
        %v573 = vpop.f32.mrf.mxu0
        %574 = vmatprep.mubr.f32.mxu0 0.0
        %575 = vmatmul.mubr.f32.gmra.mxu0 %v455
        %v576 = vpop.f32.mrf.mxu0
        %v577 = vadd.f32 %v488, %v576
        %v578 = vpop.f32.mrf.mxu0
        %579 = vmatprep.mubr.f32.mxu0 0.0
        %580 = vmatmul.mubr.f32.gmra.mxu0 %v456
        %v581 = vpop.f32.mrf.mxu0
        %v582 = vadd.f32 %v488, %v581
        %v583 = vpop.f32.mrf.mxu0
        %584 = vmatprep.mubr.f32.mxu0 0.0
        %585 = vmatmul.mubr.f32.gmra.mxu0 %v457
        %v586 = vpop.f32.mrf.mxu0
        %v587 = vadd.f32 %v488, %v586
        %v588 = vpop.f32.mrf.mxu0
        %589 = vmatprep.mubr.f32.mxu0 0.0
        %590 = vmatmul.mubr.f32.gmra.mxu0 %v458
        %v591 = vpop.f32.mrf.mxu0
        %v592 = vadd.f32 %v488, %v591
        %v593 = vpop.f32.mrf.mxu0
        %594 = vmatprep.mubr.f32.mxu0 0.0
        %595 = vmatmul.mubr.f32.gmra.mxu0 %v459
        %v596 = vpop.f32.mrf.mxu0
        %v597 = vadd.f32 %v488, %v596
        %v598 = vpop.f32.mrf.mxu0
        %599 = vmatprep.mubr.f32.mxu0 0.0
        %600 = vmatmul.mubr.f32.gmra.mxu0 %v460
        %v601 = vpop.f32.mrf.mxu0
        %v602 = vadd.f32 %v488, %v601
        %v603 = vpop.f32.mrf.mxu0
        %604 = vmatprep.mubr.f32.mxu0 0.0
        %605 = vmatmul.mubr.f32.gmra.mxu0 %v461
        %v606 = vpop.f32.mrf.mxu0
        %v607 = vadd.f32 %v488, %v606
        %v608 = vpop.f32.mrf.mxu0
        %609 = vmatprep.mubr.f32.mxu0 0.0
        %610 = vmatmul.mubr.f32.gmra.mxu0 %v462
        %v611 = vpop.f32.mrf.mxu0
        %v612 = vadd.f32 %v488, %v611
        %v613 = vpop.f32.mrf.mxu0
        %614 = vmatprep.mubr.f32.mxu0 0.0
        %615 = vmatmul.mubr.f32.gmra.mxu0 %v463
        %v616 = vpop.f32.mrf.mxu0
        %v617 = vadd.f32 %v488, %v616
        %v618 = vpop.f32.mrf.mxu0
        %619 = vmatprep.mubr.f32.mxu0 0.0
        %620 = vmatmul.mubr.f32.gmra.mxu0 %v464
        %v621 = vpop.f32.mrf.mxu0
        %v622 = vadd.f32 %v488, %v621
        %v623 = vpop.f32.mrf.mxu0
        %624 = vmatprep.mubr.f32.mxu0 0.0
        %625 = vmatmul.mubr.f32.gmra.mxu0 %v465
        %v626 = vpop.f32.mrf.mxu0
        %v627 = vadd.f32 %v488, %v626
        %v628 = vpop.f32.mrf.mxu0
        %629 = vmatprep.mubr.f32.mxu0 0.0
        %630 = vmatmul.mubr.f32.gmra.mxu0 %v466
        %v631 = vpop.f32.mrf.mxu0
        %v632 = vadd.f32 %v488, %v631
        %v633 = vpop.f32.mrf.mxu0
        %634 = vdwg.mxu0
        %v635 = vmax.f32 %v557, 0.0
        %v636 = vmax.f32 %v562, 0.0
        %v637 = vmax.f32 %v567, 0.0
        %v638 = vmax.f32 %v572, 0.0
        %v639 = vmax.f32 %v577, 0.0
        %v640 = vmax.f32 %v582, 0.0
        %v641 = vmax.f32 %v587, 0.0
        %v642 = vmax.f32 %v592, 0.0
        %v643 = vmax.f32 %v597, 0.0
        %v644 = vmax.f32 %v602, 0.0
        %v645 = vmax.f32 %v607, 0.0
        %v646 = vmax.f32 %v612, 0.0
        %v647 = vmax.f32 %v617, 0.0
        %v648 = vmax.f32 %v622, 0.0
        %v649 = vmax.f32 %v627, 0.0
        %v650 = vmax.f32 %v632, 0.0
        %651 = vst [vmem:[%s218] sm:$0xff] %v635
        %652 = vst [vmem:[%s218 + $0x8] sm:$0xff] %v636
        %653 = vst [vmem:[%s218 + $0x10] sm:$0xff] %v637
        %654 = vst [vmem:[%s218 + $0x18] sm:$0xff] %v638
        %655 = vst [vmem:[%s218 + $0x20] sm:$0xff] %v639
        %656 = vst [vmem:[%s218 + $0x28] sm:$0xff] %v640
        %657 = vst [vmem:[%s218 + $0x30] sm:$0xff] %v641
        %658 = vst [vmem:[%s218 + $0x38] sm:$0xff] %v642
        %659 = vst [vmem:[%s218 + $0x40] sm:$0xff] %v643
        %660 = vst [vmem:[%s218 + $0x48] sm:$0xff] %v644
        %661 = vst [vmem:[%s218 + $0x50] sm:$0xff] %v645
        %662 = vst [vmem:[%s218 + $0x58] sm:$0xff] %v646
        %663 = vst [vmem:[%s218 + $0x60] sm:$0xff] %v647
        %664 = vst [vmem:[%s218 + $0x68] sm:$0xff] %v648
        %665 = vst [vmem:[%s218 + $0x70] sm:$0xff] %v649
        %666 = vst [vmem:[%s218 + $0x78] sm:$0xff] %v650
        %s667 = sand.u32 %s137, 1
        %s668 = scalar_lea.sflag [#allocation3], %s667
        %s669 = sand.u32 %s137, 1
        %s670 = smul.addr %s669, 128
        %s671 = scalar_lea.vmem [#allocation2], %s670
        // Predicated region
        $region41: #{tpu_custom_call.1} parent=39 // pred_check
          %p672 = pneg %p147
        $region42: #{tpu_custom_call.1} parent=39 // pred_check_branch
          %674 = sbr.rel (%p672) target = $region44
        $region43: #{tpu_custom_call.1} parent=39 // pred_region
          %s675 = smul.u32 16, %s19
          %s677 = ssub.s32 2048, 2048
          %678 = vsyncadd %s668, %s677
          %s679 = smul.addr %s675, 128
          %s680 = scalar_lea.hbm %s5, %s679
          %s681 = sshll.u32 %s671, 4
          %s682 = int_to_ptr.vmem [resolvable:$true] %s681
          %687 = dma.vmem_to_hbm [thread:$0]  %s682, 2048, %s680, %s668, 128, 128, 8
        $region44: #{tpu_custom_call.1} parent=39 // pred_fallthru
          _
      $region40: #{tpu_custom_call.1} parent=5 // pred_fallthru
        _
      %p688 = scmp.le.s32.totalorder 2, %s14
      // Predicated region
      $region45: #{tpu_custom_call.1} parent=5 // pred_check
        %p689 = pneg %p688
      $region46: #{tpu_custom_call.1} parent=5 // pred_check_branch
        %691 = sbr.rel (%p689) target = $region48
      $region47: #{tpu_custom_call.1} parent=5 // pred_region
        %s692 = ssub.s32 %s14, 2
        // Predicated region
        $region49: #{tpu_custom_call.1} parent=47 // pred_check
          %p693 = pneg %p153
        $region50: #{tpu_custom_call.1} parent=47 // pred_check_branch
          %695 = sbr.rel (%p693) target = $region52
        $region51: #{tpu_custom_call.1} parent=47 // pred_region
          %s696 = sand.u32 %s138, 1
          %s697 = scalar_lea.sflag [#allocation3], %s696
          %s698 = sand.u32 %s138, 1
          %s699 = smul.addr %s698, 128
          %s700 = scalar_lea.vmem [#allocation2], %s699
          %701 = dma.done %s697, 2048
        $region52: #{tpu_custom_call.1} parent=47 // pred_fallthru
          _
      $region48: #{tpu_custom_call.1} parent=5 // pred_fallthru
        _
    $region6: #{tpu_custom_call.1} parent=1 // loop_footer
      %s18 = sadd.s32 1, %s14
    $region7: #{tpu_custom_call.1} parent=1 // loop_footer_branch
      %13 = sbr.rel target = $region3
    $region8: #{tpu_custom_call.1} parent=1 // loop_exit
      _
    %702 = vsyncpa [#allocation3], 1
    %s703 = scalar_lea.sflag [#allocation3], 1
    %704 = vsyncpa %s703, 1

</llo_original>
